<compile_context>
chip_gen: v7x
topology: tpu7x:2x2x1
jax: 0.10.0
libtpu: 0.0.40
codegen_flags: <defaults>
</compile_context>

<pallas_src>
import functools

import jax
import jax.numpy as jnp
from jax import lax
from jax.experimental import pallas as pl
from jax.experimental.pallas import tpu as pltpu

KH = KW = 3        # kernel_size=3 (padding=1)
EPS = 1e-5         # nn.BatchNorm2d default eps
CONV_DTYPE = jnp.float32   # flip to jnp.bfloat16 to trade accuracy for MXU rate


# --------------------------------------------------------------------------- #
# kernel 1: 3x3 conv as a single im2col matmul + bias + BN partial statistics
# --------------------------------------------------------------------------- #
def _conv_stats_kernel(cols_ref, w_ref, b_ref, y_ref, sum_ref, sq_ref):
    # cols_ref : (1, 9*Cin, T)    im2col slab for one (batch, spatial-tile)
    # w_ref    : (Cout, 9*Cin)    conv weight, all 9 taps folded into K
    # b_ref    : (Cout, 1)        conv bias
    # y_ref    : (1, Cout, T)     conv + bias (pre-BN), lane-dense store
    # sum_ref  : (1, 1, Cout, 1)  per-(batch, tile) partial sum        (BN stats)
    # sq_ref   : (1, 1, Cout, 1)  per-(batch, tile) partial sum-square (BN stats)
    acc = jnp.dot(w_ref[...], cols_ref[0],
                  preferred_element_type=jnp.float32)        # (Cout, T) on the MXU
    acc = acc + b_ref[...]                                   # per-channel bias
    y_ref[0] = acc
    # both reductions taken from the same in-register value (lane-axis reduce)
    sum_ref[0, 0] = jnp.sum(acc, axis=1, keepdims=True)
    sq_ref[0, 0] = jnp.sum(acc * acc, axis=1, keepdims=True)


# --------------------------------------------------------------------------- #
# kernel 2: folded BatchNorm affine + ReLU (lane-dense blocks)
# --------------------------------------------------------------------------- #
def _bn_relu_kernel(c_ref, scale_ref, shift_ref, y_ref):
    # c_ref     : (1, Cout, T)   pre-BN conv output tile
    # scale_ref : (Cout, 1)      gamma / sqrt(var + eps)
    # shift_ref : (Cout, 1)      beta - mean * scale
    # y_ref     : (1, Cout, T)   BN + ReLU output, lane-dense store
    y_ref[0] = jnp.maximum(c_ref[0] * scale_ref[...] + shift_ref[...], 0.0)


# --------------------------------------------------------------------------- #
# kernel 3: 2x2 max-pool over a (rows, 2, Wh, 2) window view of y
# --------------------------------------------------------------------------- #
def _pool_kernel(y_ref, p_ref):
    # y_ref : (R, 2, Wh, 2)   R rows of (n, c, hh); each row holds a 2-row strip
    # p_ref : (R, Wh)
    v = y_ref[...]
    p_ref[...] = jnp.max(jnp.max(v, axis=3), axis=1)


# --------------------------------------------------------------------------- #
# tiling helpers
# --------------------------------------------------------------------------- #
def _pick_spatial_tile(hw, k9, cout, budget_bytes=8 << 20):
    """Largest spatial (lane) tile that divides H*W, stays a multiple of 128 while
    shrinking, and keeps the double-buffered conv blocks inside a small VMEM
    budget (sized for v7x's 64 MiB VMEM / 32 MiB scoped default)."""
    per_lane = 2 * 4 * (k9 + cout)            # f32 in + out, double buffered
    cap = max(128, budget_bytes // per_lane)
    t = hw
    while t > cap and t % 2 == 0 and (t // 2) % 128 == 0:
        t //= 2
    return t


def _pick_row_block(rows, max_rows=512):
    """Row block for the pool pass: large, multiple of 8, dividing `rows`."""
    t = rows
    while t > max_rows and t % 2 == 0 and (t // 2) % 8 == 0:
        t //= 2
    return t


# --------------------------------------------------------------------------- #
# forward wrapper
# --------------------------------------------------------------------------- #
def encoder_block_forward(x_nchw, weight_oihw, bias, gamma, beta):
    N, Cin, H, W = x_nchw.shape
    Cout = weight_oihw.shape[0]
    Hh, Wh = H // 2, W // 2
    HW = H * W
    K9 = KH * KW * Cin

    # ---- glue: im2col (taps folded onto the contraction axis), channel-major ----
    # TODO(synk): move the halo/im2col construction in-kernel (manual DMA of padded
    # rows) to drop this wrapper-side HBM pass; kept as XLA glue here for clarity.
    x = x_nchw.astype(jnp.float32)
    xp = jnp.pad(x, ((0, 0), (0, 0), (1, 1), (1, 1)))            # padding=1
    taps = [xp[:, :, ky:ky + H, kx:kx + W].reshape(N, Cin, HW)
            for ky in range(KH) for kx in range(KW)]
    cols = jnp.concatenate(taps, axis=1).astype(CONV_DTYPE)      # (N, 9*Cin, H*W)
    wmat = (jnp.transpose(weight_oihw, (0, 2, 3, 1))
            .reshape(Cout, K9).astype(CONV_DTYPE))               # (Cout, 9*Cin)
    bvec = bias.reshape(Cout, 1).astype(jnp.float32)

    thw = _pick_spatial_tile(HW, K9, Cout)
    T = HW // thw

    # ---- kernel 1: conv matmul + bias + per-(batch, tile) BN partial stats ------
    conv_y, csum, csq = pl.pallas_call(
        _conv_stats_kernel,
        grid=(N, T),
        in_specs=[
            pl.BlockSpec((1, K9, thw), lambda n, t: (n, 0, t)),
            pl.BlockSpec((Cout, K9), lambda n, t: (0, 0)),
            pl.BlockSpec((Cout, 1), lambda n, t: (0, 0)),
        ],
        out_specs=[
            pl.BlockSpec((1, Cout, thw), lambda n, t: (n, 0, t)),
            pl.BlockSpec((1, 1, Cout, 1), lambda n, t: (n, t, 0, 0)),
            pl.BlockSpec((1, 1, Cout, 1), lambda n, t: (n, t, 0, 0)),
        ],
        out_shape=[
            jax.ShapeDtypeStruct((N, Cout, HW), jnp.float32),
            jax.ShapeDtypeStruct((N, T, Cout, 1), jnp.float32),
            jax.ShapeDtypeStruct((N, T, Cout, 1), jnp.float32),
        ],
        compiler_params=pltpu.CompilerParams(
            dimension_semantics=("parallel", "parallel")),
    )(cols, wmat, bvec)

    # ---- glue: fold training-mode BatchNorm into per-channel scale / shift ------
    cnt = jnp.float32(N * HW)
    mean = jnp.sum(csum, axis=(0, 1))[:, 0] / cnt
    ex2 = jnp.sum(csq, axis=(0, 1))[:, 0] / cnt
    # biased variance via E[x^2] - mean^2 in f32; clamped against cancellation.
    var = jnp.maximum(ex2 - mean * mean, 0.0)
    inv_std = lax.rsqrt(var + EPS)
    scale = (gamma * inv_std).reshape(Cout, 1).astype(jnp.float32)
    shift = (beta - mean * gamma * inv_std).reshape(Cout, 1).astype(jnp.float32)

    # ---- kernel 2: BN affine + ReLU over large lane-dense tiles ------------------
    y_flat = pl.pallas_call(
        _bn_relu_kernel,
        grid=(N, T),
        in_specs=[
            pl.BlockSpec((1, Cout, thw), lambda n, t: (n, 0, t)),
            pl.BlockSpec((Cout, 1), lambda n, t: (0, 0)),
            pl.BlockSpec((Cout, 1), lambda n, t: (0, 0)),
        ],
        out_specs=pl.BlockSpec((1, Cout, thw), lambda n, t: (n, 0, t)),
        out_shape=jax.ShapeDtypeStruct((N, Cout, HW), jnp.float32),
        compiler_params=pltpu.CompilerParams(
            dimension_semantics=("parallel", "parallel")),
    )(conv_y, scale, shift)

    # ---- kernel 3: 2x2 max-pool over a free window view of y ---------------------
    rows = N * Cout * Hh
    y_win = y_flat.reshape(rows, 2, Wh, 2)       # free row-major view
    r_blk = _pick_row_block(rows)
    pooled_rows = pl.pallas_call(
        _pool_kernel,
        grid=(rows // r_blk,),
        in_specs=[pl.BlockSpec((r_blk, 2, Wh, 2), lambda i: (i, 0, 0, 0))],
        out_specs=pl.BlockSpec((r_blk, Wh), lambda i: (i, 0)),
        out_shape=jax.ShapeDtypeStruct((rows, Wh), jnp.float32),
        compiler_params=pltpu.CompilerParams(dimension_semantics=("parallel",)),
    )(y_win)

    # channel-major flat layout == NCHW: only free reshapes back to 4-D.
    y_nchw = y_flat.reshape(N, Cout, H, W)
    pooled_nchw = pooled_rows.reshape(N, Cout, Hh, Wh)
    return y_nchw, pooled_nchw


# --------------------------------------------------------------------------- #
# pure-JAX reference (training-mode BatchNorm, biased variance)
# --------------------------------------------------------------------------- #
def reference_forward(x_nchw, weight_oihw, bias, gamma, beta):
    x = jnp.transpose(x_nchw, (0, 2, 3, 1))
    w = jnp.transpose(weight_oihw, (2, 3, 1, 0))
    conv = lax.conv_general_dilated(
        x, w, (1, 1), "SAME",
        dimension_numbers=("NHWC", "HWIO", "NHWC")) + bias
    mean = jnp.mean(conv, axis=(0, 1, 2))
    var = jnp.mean((conv - mean) ** 2, axis=(0, 1, 2))
    y = (conv - mean) / jnp.sqrt(var + EPS) * gamma + beta
    y = jnp.maximum(y, 0.0)
    pooled = lax.reduce_window(y, -jnp.inf, lax.max,
                               (1, 2, 2, 1), (1, 2, 2, 1), "VALID")
    return jnp.transpose(y, (0, 3, 1, 2)), jnp.transpose(pooled, (0, 3, 1, 2))


if __name__ == "__main__":
    N, Cin, Cout, H, W = 2, 4, 8, 16, 16

    key = jax.random.PRNGKey(0)
    k_x, k_w, k_b = jax.random.split(key, 3)
    x = jax.random.normal(k_x, (N, Cin, H, W), jnp.float32)
    weight = jax.random.normal(k_w, (Cout, Cin, KH, KW), jnp.float32) * 0.1
    bias = jax.random.normal(k_b, (Cout,), jnp.float32) * 0.1
    gamma = jnp.ones((Cout,), jnp.float32)   # nn.BatchNorm2d default affine init
    beta = jnp.zeros((Cout,), jnp.float32)

    fwd = jax.jit(encoder_block_forward)
    y, y_pooled = fwd(x, weight, bias, gamma, beta)
    jax.block_until_ready((y, y_pooled))

    y_ref, pooled_ref = reference_forward(x, weight, bias, gamma, beta)
    assert y.shape == (N, Cout, H, W)
    assert y_pooled.shape == (N, Cout, H // 2, W // 2)
    assert jnp.allclose(y, y_ref, atol=2e-3, rtol=2e-3)
    assert jnp.allclose(y_pooled, pooled_ref, atol=2e-3, rtol=2e-3)

    print("KERNEL_OK")
</pallas_src>

<mosaic_0001>
module attributes {stable_mosaic.version = 11 : i64} {
  func.func @_conv_stats_kernel(%arg0: i32, %arg1: i32, %arg2: memref<1x36x256xf32, #tpu.memory_space<vmem>>, %arg3: memref<8x36xf32, #tpu.memory_space<vmem>>, %arg4: memref<8x1xf32, #tpu.memory_space<vmem>>, %arg5: memref<1x8x256xf32, #tpu.memory_space<vmem>>, %arg6: memref<1x1x8x1xf32, #tpu.memory_space<vmem>>, %arg7: memref<1x1x8x1xf32, #tpu.memory_space<vmem>>) attributes {dimension_semantics = [#tpu.dimension_semantics<parallel>, #tpu.dimension_semantics<parallel>], iteration_bounds = array<i64: 2, 1>, scalar_prefetch = 0 : i64, scratch_operands = 0 : i64, tpu.core_type = #tpu.core_type<tc>, window_params = [{transform_indices = @transform_0, window_bounds = array<i64: 1, 36, 256>}, {pipeline_mode = #tpu.pipeline_mode<synchronous>, transform_indices = @transform_1, window_bounds = array<i64: 8, 36>}, {pipeline_mode = #tpu.pipeline_mode<synchronous>, transform_indices = @transform_2, window_bounds = array<i64: 8, 1>}, {transform_indices = @transform_3, window_bounds = array<i64: 1, 8, 256>}, {transform_indices = @transform_4, window_bounds = array<i64: 1, 1, 8, 1>}, {transform_indices = @transform_5, window_bounds = array<i64: 1, 1, 8, 1>}]} {
    %c0 = arith.constant 0 : index
    %c0_0 = arith.constant 0 : index
    %0 = vector.load %arg3[%c0, %c0_0] : memref<8x36xf32, #tpu.memory_space<vmem>>, vector<8x36xf32>
    %c0_1 = arith.constant 0 : index
    %c0_2 = arith.constant 0 : index
    %c0_3 = arith.constant 0 : index
    %1 = vector.load %arg2[%c0_1, %c0_2, %c0_3] : memref<1x36x256xf32, #tpu.memory_space<vmem>>, vector<1x36x256xf32>
    %2 = vector.shape_cast %1 : vector<1x36x256xf32> to vector<36x256xf32>
    %cst = arith.constant dense<0.000000e+00> : vector<8x256xf32>
    %3 = tpu.matmul %0, %2, %cst {dimension_numbers = #tpu.dot_dimension_numbers<[1], [0], [0], [1], [0, 0, 1, 1], [], []>} : vector<8x36xf32>, vector<36x256xf32>, vector<8x256xf32> -> vector<8x256xf32>
    %c0_4 = arith.constant 0 : index
    %c0_5 = arith.constant 0 : index
    %4 = vector.load %arg4[%c0_4, %c0_5] : memref<8x1xf32, #tpu.memory_space<vmem>>, vector<8x1xf32>
    %5 = vector.broadcast %4 : vector<8x1xf32> to vector<8x256xf32>
    %6 = arith.addf %3, %5 : vector<8x256xf32>
    %c0_6 = arith.constant 0 : index
    %c0_7 = arith.constant 0 : index
    %c0_8 = arith.constant 0 : index
    %7 = vector.load %arg5[%c0_6, %c0_7, %c0_8] : memref<1x8x256xf32, #tpu.memory_space<vmem>>, vector<1x8x256xf32>
    %8 = vector.shape_cast %7 : vector<1x8x256xf32> to vector<8x256xf32>
    %9 = vector.shape_cast %6 : vector<8x256xf32> to vector<1x8x256xf32>
    tpu.vector_store %arg5[%c0_6, %c0_7, %c0_8], %9 {strides = array<i32>} : memref<1x8x256xf32, #tpu.memory_space<vmem>>, vector<1x8x256xf32>,
    %cst_9 = arith.constant dense<0.000000e+00> : vector<8xf32>
    %10 = vector.multi_reduction <add>, %6, %cst_9 [1] : vector<8x256xf32> to vector<8xf32>
    %11 = vector.shape_cast %10 : vector<8xf32> to vector<8x1xf32>
    %c0_10 = arith.constant 0 : index
    %c0_11 = arith.constant 0 : index
    %c0_12 = arith.constant 0 : index
    %c0_13 = arith.constant 0 : index
    %12 = vector.load %arg6[%c0_10, %c0_11, %c0_12, %c0_13] : memref<1x1x8x1xf32, #tpu.memory_space<vmem>>, vector<1x1x8x1xf32>
    %13 = vector.shape_cast %12 : vector<1x1x8x1xf32> to vector<8x1xf32>
    %14 = vector.shape_cast %11 : vector<8x1xf32> to vector<1x1x8x1xf32>
    tpu.vector_store %arg6[%c0_10, %c0_11, %c0_12, %c0_13], %14 {strides = array<i32>} : memref<1x1x8x1xf32, #tpu.memory_space<vmem>>, vector<1x1x8x1xf32>,
    %15 = arith.mulf %6, %6 : vector<8x256xf32>
    %cst_14 = arith.constant dense<0.000000e+00> : vector<8xf32>
    %16 = vector.multi_reduction <add>, %15, %cst_14 [1] : vector<8x256xf32> to vector<8xf32>
    %17 = vector.shape_cast %16 : vector<8xf32> to vector<8x1xf32>
    %c0_15 = arith.constant 0 : index
    %c0_16 = arith.constant 0 : index
    %c0_17 = arith.constant 0 : index
    %c0_18 = arith.constant 0 : index
    %18 = vector.load %arg7[%c0_15, %c0_16, %c0_17, %c0_18] : memref<1x1x8x1xf32, #tpu.memory_space<vmem>>, vector<1x1x8x1xf32>
    %19 = vector.shape_cast %18 : vector<1x1x8x1xf32> to vector<8x1xf32>
    %20 = vector.shape_cast %17 : vector<8x1xf32> to vector<1x1x8x1xf32>
    tpu.vector_store %arg7[%c0_15, %c0_16, %c0_17, %c0_18], %20 {strides = array<i32>} : memref<1x1x8x1xf32, #tpu.memory_space<vmem>>, vector<1x1x8x1xf32>,
    return
  }
  func.func @transform_0(%arg0: i32, %arg1: i32) -> (i32, i32, i32) {
    %c0_i32 = arith.constant 0 : i32
    %c0_i32_0 = arith.constant 0 : i32
    return %arg0, %c0_i32, %arg1 : i32, i32, i32
  }
  func.func @transform_1(%arg0: i32, %arg1: i32) -> (i32, i32) {
    %c0_i32 = arith.constant 0 : i32
    %c0_i32_0 = arith.constant 0 : i32
    %c0_i32_1 = arith.constant 0 : i32
    return %c0_i32, %c0_i32_0 : i32, i32
  }
  func.func @transform_2(%arg0: i32, %arg1: i32) -> (i32, i32) {
    %c0_i32 = arith.constant 0 : i32
    %c0_i32_0 = arith.constant 0 : i32
    %c0_i32_1 = arith.constant 0 : i32
    return %c0_i32, %c0_i32_0 : i32, i32
  }
  func.func @transform_3(%arg0: i32, %arg1: i32) -> (i32, i32, i32) {
    %c0_i32 = arith.constant 0 : i32
    %c0_i32_0 = arith.constant 0 : i32
    return %arg0, %c0_i32, %arg1 : i32, i32, i32
  }
  func.func @transform_4(%arg0: i32, %arg1: i32) -> (i32, i32, i32, i32) {
    %c0_i32 = arith.constant 0 : i32
    %c0_i32_0 = arith.constant 0 : i32
    %c0_i32_1 = arith.constant 0 : i32
    return %arg0, %arg1, %c0_i32, %c0_i32_0 : i32, i32, i32, i32
  }
  func.func @transform_5(%arg0: i32, %arg1: i32) -> (i32, i32, i32, i32) {
    %c0_i32 = arith.constant 0 : i32
    %c0_i32_0 = arith.constant 0 : i32
    %c0_i32_1 = arith.constant 0 : i32
    return %arg0, %arg1, %c0_i32, %c0_i32_0 : i32, i32, i32, i32
  }
}

module attributes {stable_mosaic.version = 11 : i64} {
  func.func @_bn_relu_kernel(%arg0: i32, %arg1: i32, %arg2: memref<1x8x256xf32, #tpu.memory_space<vmem>>, %arg3: memref<8x1xf32, #tpu.memory_space<vmem>>, %arg4: memref<8x1xf32, #tpu.memory_space<vmem>>, %arg5: memref<1x8x256xf32, #tpu.memory_space<vmem>>) attributes {dimension_semantics = [#tpu.dimension_semantics<parallel>, #tpu.dimension_semantics<parallel>], iteration_bounds = array<i64: 2, 1>, scalar_prefetch = 0 : i64, scratch_operands = 0 : i64, tpu.core_type = #tpu.core_type<tc>, window_params = [{transform_indices = @transform_0, window_bounds = array<i64: 1, 8, 256>}, {pipeline_mode = #tpu.pipeline_mode<synchronous>, transform_indices = @transform_1, window_bounds = array<i64: 8, 1>}, {pipeline_mode = #tpu.pipeline_mode<synchronous>, transform_indices = @transform_2, window_bounds = array<i64: 8, 1>}, {transform_indices = @transform_3, window_bounds = array<i64: 1, 8, 256>}]} {
    %c0 = arith.constant 0 : index
    %c0_0 = arith.constant 0 : index
    %c0_1 = arith.constant 0 : index
    %0 = vector.load %arg2[%c0, %c0_0, %c0_1] : memref<1x8x256xf32, #tpu.memory_space<vmem>>, vector<1x8x256xf32>
    %1 = vector.shape_cast %0 : vector<1x8x256xf32> to vector<8x256xf32>
    %c0_2 = arith.constant 0 : index
    %c0_3 = arith.constant 0 : index
    %2 = vector.load %arg3[%c0_2, %c0_3] : memref<8x1xf32, #tpu.memory_space<vmem>>, vector<8x1xf32>
    %3 = vector.broadcast %2 : vector<8x1xf32> to vector<8x256xf32>
    %4 = arith.mulf %1, %3 : vector<8x256xf32>
    %c0_4 = arith.constant 0 : index
    %c0_5 = arith.constant 0 : index
    %5 = vector.load %arg4[%c0_4, %c0_5] : memref<8x1xf32, #tpu.memory_space<vmem>>, vector<8x1xf32>
    %6 = vector.broadcast %5 : vector<8x1xf32> to vector<8x256xf32>
    %7 = arith.addf %4, %6 : vector<8x256xf32>
    %cst = arith.constant 0.000000e+00 : f32
    %8 = vector.broadcast %cst : f32 to vector<8x256xf32>
    %9 = arith.maximumf %7, %8 : vector<8x256xf32>
    %c0_6 = arith.constant 0 : index
    %c0_7 = arith.constant 0 : index
    %c0_8 = arith.constant 0 : index
    %10 = vector.load %arg5[%c0_6, %c0_7, %c0_8] : memref<1x8x256xf32, #tpu.memory_space<vmem>>, vector<1x8x256xf32>
    %11 = vector.shape_cast %10 : vector<1x8x256xf32> to vector<8x256xf32>
    %12 = vector.shape_cast %9 : vector<8x256xf32> to vector<1x8x256xf32>
    tpu.vector_store %arg5[%c0_6, %c0_7, %c0_8], %12 {strides = array<i32>} : memref<1x8x256xf32, #tpu.memory_space<vmem>>, vector<1x8x256xf32>,
    return
  }
  func.func @transform_0(%arg0: i32, %arg1: i32) -> (i32, i32, i32) {
    %c0_i32 = arith.constant 0 : i32
    %c0_i32_0 = arith.constant 0 : i32
    return %arg0, %c0_i32, %arg1 : i32, i32, i32
  }
  func.func @transform_1(%arg0: i32, %arg1: i32) -> (i32, i32) {
    %c0_i32 = arith.constant 0 : i32
    %c0_i32_0 = arith.constant 0 : i32
    %c0_i32_1 = arith.constant 0 : i32
    return %c0_i32, %c0_i32_0 : i32, i32
  }
  func.func @transform_2(%arg0: i32, %arg1: i32) -> (i32, i32) {
    %c0_i32 = arith.constant 0 : i32
    %c0_i32_0 = arith.constant 0 : i32
    %c0_i32_1 = arith.constant 0 : i32
    return %c0_i32, %c0_i32_0 : i32, i32
  }
  func.func @transform_3(%arg0: i32, %arg1: i32) -> (i32, i32, i32) {
    %c0_i32 = arith.constant 0 : i32
    %c0_i32_0 = arith.constant 0 : i32
    return %arg0, %c0_i32, %arg1 : i32, i32, i32
  }
}

module attributes {stable_mosaic.version = 11 : i64} {
  func.func @_pool_kernel(%arg0: i32, %arg1: memref<128x2x8x2xf32, #tpu.memory_space<vmem>>, %arg2: memref<128x8xf32, #tpu.memory_space<vmem>>) attributes {dimension_semantics = [#tpu.dimension_semantics<parallel>], iteration_bounds = array<i64: 1>, scalar_prefetch = 0 : i64, scratch_operands = 0 : i64, tpu.core_type = #tpu.core_type<tc>, window_params = [{transform_indices = @transform_0, window_bounds = array<i64: 128, 2, 8, 2>}, {transform_indices = @transform_1, window_bounds = array<i64: 128, 8>}]} {
    %c0 = arith.constant 0 : index
    %c0_0 = arith.constant 0 : index
    %c0_1 = arith.constant 0 : index
    %c0_2 = arith.constant 0 : index
    %0 = vector.load %arg1[%c0, %c0_0, %c0_1, %c0_2] : memref<128x2x8x2xf32, #tpu.memory_space<vmem>>, vector<128x2x8x2xf32>
    %cst = arith.constant dense<0xFF800000> : vector<128x2x8xf32>
    %1 = vector.multi_reduction <maximumf>, %0, %cst [3] : vector<128x2x8x2xf32> to vector<128x2x8xf32>
    %cst_3 = arith.constant dense<0xFF800000> : vector<128x8xf32>
    %2 = vector.multi_reduction <maximumf>, %1, %cst_3 [1] : vector<128x2x8xf32> to vector<128x8xf32>
    %c0_4 = arith.constant 0 : index
    %c0_5 = arith.constant 0 : index
    %3 = vector.load %arg2[%c0_4, %c0_5] : memref<128x8xf32, #tpu.memory_space<vmem>>, vector<128x8xf32>
    tpu.vector_store %arg2[%c0_4, %c0_5], %2 {strides = array<i32>} : memref<128x8xf32, #tpu.memory_space<vmem>>, vector<128x8xf32>,
    return
  }
  func.func @transform_0(%arg0: i32) -> (i32, i32, i32, i32) {
    %c0_i32 = arith.constant 0 : i32
    %c0_i32_0 = arith.constant 0 : i32
    %c0_i32_1 = arith.constant 0 : i32
    %c0_i32_2 = arith.constant 0 : i32
    return %arg0, %c0_i32, %c0_i32_0, %c0_i32_1 : i32, i32, i32, i32
  }
  func.func @transform_1(%arg0: i32) -> (i32, i32) {
    %c0_i32 = arith.constant 0 : i32
    %c0_i32_0 = arith.constant 0 : i32
    return %arg0, %c0_i32 : i32, i32
  }
}

</mosaic_0001>

<llo_original>
// kernel: encoder_block_forward.4
$region0: #{encoder_block_forward.4}
  #allocation0 [shape = 'u32[]', space=smem, size = 0x4, offset = 0x4, fixed_abs, tag = 'smem constant byte address 0x4 - core index']
  #allocation1 [shape = 'u32[144,128]{1,0:T(1,128)}', space=vmem, size = 0x12000, scoped, tag = 'internal scratch']
  %s0 = inlined_call_operand.vmem [shape: f32[2,8,256], index: 0, kind: input, shape index: {}]
  %s1 = inlined_call_operand.vmem [shape: f32[8,1], index: 1, kind: input, shape index: {}]
  %s2 = inlined_call_operand.vmem [shape: f32[8,1], index: 2, kind: input, shape index: {}]
  %s3 = inlined_call_operand.vmem [shape: f32[2,8,256], index: 3, kind: output, shape index: {}]
  %s4 = sld [smem:[#allocation0]]
  $region45: #{encoder_block_forward.4} parent=0
    _
  %s6 = ssub.s32 1, %s4
  %s7 = scalar_select 0, %s6, %s4
  loop: start=0, step=1, limit=4
  $region2: #{encoder_block_forward.4} parent=0 // loop_pre_header
    _
  $region3: #{encoder_block_forward.4} parent=0 // loop_header
    %s9 = sphi 0, %s13
    %p10 = scmp.ge.s32.totalorder %s9, 4
    %s16 = sphi 0, %s28
    %s17 = sphi 0, %s24
    %s18 = sphi 0, %s16
    %s19 = sphi 0, %s17
    %s20 = sphi 0, %s18
    %s21 = sphi 0, %s19
    %s33 = sphi 0, %s35
    %s36 = sphi 0, %s33
    %s37 = sphi 0, %s36
    %s53 = sphi 0, %s37
    %s57 = sphi 0, %s57
    %s59 = sphi 0, %s57
    %s60 = sphi 0, %s59
    %s74 = sphi 0, %s60
    %s78 = sphi 0, %s78
    %s80 = sphi 0, %s78
    %s81 = sphi 0, %s80
    %s95 = sphi 0, %s81
    %s103 = sphi 0, %s105
    %s106 = sphi 0, %s103
    %s107 = sphi 0, %s106
    %s123 = sphi 0, %s107
  $region4: #{encoder_block_forward.4} parent=0 // loop_header_branch
    %12 = sbr.rel (%p10) target = $region8
  $region5: #{encoder_block_forward.4} parent=0 // loop_body
    %s14 = ssub.s32 %s9, 1
    %s15 = ssub.s32 %s9, 2
    %s22 = sadd.s32 1, %s17
    %p23 = scmp.ge.s32.totalorder %s22, 1
    %s24 = scalar_select %p23, 0, %s22
    %s25 = sadd.s32 1, %s16
    %s26 = scalar_select %p23, %s25, %s16
    %p27 = scmp.ge.s32.totalorder %s26, 2
    %s28 = scalar_select %p27, 0, %s26
    %s29 = ssub.s32 %s16, %s28
    %s30 = ssub.s32 %s17, %s24
    %s31 = sor.u32 %s29, %s30
    %p32 = scmp.eq.s32.totalorder %s31, 0
    %s34 = sadd.s32 %s33, 1
    %s35 = scalar_select %p32, %s33, %s34
    %p38 = pneg %p32
    %p39 = scmp.eq.s32.totalorder %s9, 1
    %p40 = por %p38, %p39
    %p41 = scmp.ne.s32.totalorder %s33, %s36
    %p42 = scmp.eq.s32.totalorder %s9, 0
    %p43 = por %p41, %p42
    %p44 = scmp.ne.s32.totalorder %s33, %s36
    %p45 = scmp.eq.s32.totalorder %s14, 1
    %p46 = por %p44, %p45
    %p47 = scmp.ne.s32.totalorder %s36, %s37
    %p48 = scmp.eq.s32.totalorder %s14, 0
    %p49 = por %p47, %p48
    %p50 = scmp.ne.s32.totalorder %s36, %s37
    %p51 = scmp.eq.s32.totalorder %s15, 1
    %p52 = por %p50, %p51
    %p54 = scmp.ne.s32.totalorder %s37, %s53
    %p55 = scmp.eq.s32.totalorder %s15, 0
    %p56 = por %p54, %p55
    %s58 = sadd.s32 %s57, 1
    %p61 = scmp.eq.s32.totalorder %s9, 1
    %p62 = scmp.ne.s32.totalorder %s57, %s59
    %p63 = scmp.eq.s32.totalorder %s9, 0
    %p64 = por %p62, %p63
    %p65 = scmp.ne.s32.totalorder %s57, %s59
    %p66 = scmp.eq.s32.totalorder %s14, 1
    %p67 = por %p65, %p66
    %p68 = scmp.ne.s32.totalorder %s59, %s60
    %p69 = scmp.eq.s32.totalorder %s14, 0
    %p70 = por %p68, %p69
    %p71 = scmp.ne.s32.totalorder %s59, %s60
    %p72 = scmp.eq.s32.totalorder %s15, 1
    %p73 = por %p71, %p72
    %p75 = scmp.ne.s32.totalorder %s60, %s74
    %p76 = scmp.eq.s32.totalorder %s15, 0
    %p77 = por %p75, %p76
    %s79 = sadd.s32 %s78, 1
    %p82 = scmp.eq.s32.totalorder %s9, 1
    %p83 = scmp.ne.s32.totalorder %s78, %s80
    %p84 = scmp.eq.s32.totalorder %s9, 0
    %p85 = por %p83, %p84
    %p86 = scmp.ne.s32.totalorder %s78, %s80
    %p87 = scmp.eq.s32.totalorder %s14, 1
    %p88 = por %p86, %p87
    %p89 = scmp.ne.s32.totalorder %s80, %s81
    %p90 = scmp.eq.s32.totalorder %s14, 0
    %p91 = por %p89, %p90
    %p92 = scmp.ne.s32.totalorder %s80, %s81
    %p93 = scmp.eq.s32.totalorder %s15, 1
    %p94 = por %p92, %p93
    %p96 = scmp.ne.s32.totalorder %s81, %s95
    %p97 = scmp.eq.s32.totalorder %s15, 0
    %p98 = por %p96, %p97
    %s99 = ssub.s32 %s16, %s28
    %s100 = ssub.s32 %s17, %s24
    %s101 = sor.u32 %s99, %s100
    %p102 = scmp.eq.s32.totalorder %s101, 0
    %s104 = sadd.s32 %s103, 1
    %s105 = scalar_select %p102, %s103, %s104
    %p108 = pneg %p102
    %p109 = scmp.eq.s32.totalorder %s9, 1
    %p110 = por %p108, %p109
    %p111 = scmp.ne.s32.totalorder %s103, %s106
    %p112 = scmp.eq.s32.totalorder %s9, 0
    %p113 = por %p111, %p112
    %p114 = scmp.ne.s32.totalorder %s103, %s106
    %p115 = scmp.eq.s32.totalorder %s14, 1
    %p116 = por %p114, %p115
    %p117 = scmp.ne.s32.totalorder %s106, %s107
    %p118 = scmp.eq.s32.totalorder %s14, 0
    %p119 = por %p117, %p118
    %p120 = scmp.ne.s32.totalorder %s106, %s107
    %p121 = scmp.eq.s32.totalorder %s15, 1
    %p122 = por %p120, %p121
    %p124 = scmp.ne.s32.totalorder %s107, %s123
    %p125 = scmp.eq.s32.totalorder %s15, 0
    %p126 = por %p124, %p125
    %p127 = scmp.le.s32.totalorder 1, %s9
    %p128 = scmp.lt.s32.totalorder %s9, 3
    %p129 = pnand %p127, %p128
    %p130 = pneg %p129
    // Predicated region
    $region9: #{encoder_block_forward.4} parent=5 // pred_check
      _
    $region10: #{encoder_block_forward.4} parent=5 // pred_check_branch
      %132 = sbr.rel (%p129) target = $region12
    $region11: #{encoder_block_forward.4} parent=5 // pred_region
      %s133 = ssub.s32 %s9, 1
      // Predicated region
      $region13: #{encoder_block_forward.4} parent=11 // pred_check
        %p134 = pneg %p70
      $region14: #{encoder_block_forward.4} parent=11 // pred_check_branch
        %136 = sbr.rel (%p134) target = $region16
      $region15: #{encoder_block_forward.4} parent=11 // pred_region
        _
      $region16: #{encoder_block_forward.4} parent=11 // pred_fallthru
        _
      // Predicated region
      $region17: #{encoder_block_forward.4} parent=11 // pred_check
        %p137 = pneg %p91
      $region18: #{encoder_block_forward.4} parent=11 // pred_check_branch
        %139 = sbr.rel (%p137) target = $region20
      $region19: #{encoder_block_forward.4} parent=11 // pred_region
        _
      $region20: #{encoder_block_forward.4} parent=11 // pred_fallthru
        _
    $region12: #{encoder_block_forward.4} parent=5 // pred_fallthru
      _
    %p140 = scmp.lt.s32.totalorder %s9, 2
    // Predicated region
    $region21: #{encoder_block_forward.4} parent=5 // pred_check
      %p141 = pneg %p140
    $region22: #{encoder_block_forward.4} parent=5 // pred_check_branch
      %143 = sbr.rel (%p141) target = $region24
    $region23: #{encoder_block_forward.4} parent=5 // pred_region
      // Predicated region
      $region25: #{encoder_block_forward.4} parent=23 // pred_check
        %p144 = pneg %p43
      $region26: #{encoder_block_forward.4} parent=23 // pred_check_branch
        %146 = sbr.rel (%p144) target = $region28
      $region27: #{encoder_block_forward.4} parent=23 // pred_region
        %s147 = smul.u32 2, %s17
        %p148 = scmp.lt.s32.totalorder %s16, 1
        %s149 = scalar_select %p148, %s16, 1
        %p150 = scmp.lt.s32.totalorder %s147, 1
        %s151 = scalar_select %p150, %s147, 1
        %s152 = smul.addr %s149, 2
        %s153 = sadd.s32 %s151, %s152
        %s154 = smul.addr %s153, 8
        %s155 = scalar_lea.vmem %s0, %s154
        %s156 = smul.u32 2, %s17
      $region28: #{encoder_block_forward.4} parent=23 // pred_fallthru
        _
    $region24: #{encoder_block_forward.4} parent=5 // pred_fallthru
      _
    %p157 = scmp.le.s32.totalorder 1, %s9
    %p158 = scmp.lt.s32.totalorder %s9, 3
    %p159 = pnand %p157, %p158
    %p160 = pneg %p159
    // Predicated region
    $region29: #{encoder_block_forward.4} parent=5 // pred_check
      _
    $region30: #{encoder_block_forward.4} parent=5 // pred_check_branch
      %162 = sbr.rel (%p159) target = $region32
    $region31: #{encoder_block_forward.4} parent=5 // pred_region
      %s163 = ssub.s32 %s9, 1
      %s164 = smul.u32 2, %s19
      %p165 = scmp.lt.s32.totalorder %s18, 1
      %s166 = scalar_select %p165, %s18, 1
      %p167 = scmp.lt.s32.totalorder %s164, 1
      %s168 = scalar_select %p167, %s164, 1
      %s169 = smul.addr %s166, 2
      %s170 = sadd.s32 %s168, %s169
      %s171 = smul.addr %s170, 8
      %s172 = scalar_lea.vmem %s0, %s171
      %p173 = pneg %p49
      %p174 = pneg %p46
      %p175 = pneg %p70
      %p176 = pneg %p67
      %p177 = pneg %p91
      %p178 = pneg %p88
      %p179 = pneg %p119
      %p180 = pneg %p116
      %s181 = smul.u32 2, %s19
      %p182 = scmp.lt.s32.totalorder %s18, 1
      %s183 = scalar_select %p182, %s18, 1
      %p184 = scmp.lt.s32.totalorder %s181, 1
      %s185 = scalar_select %p184, %s181, 1
      %s186 = smul.addr %s183, 2
      %s187 = sadd.s32 %s185, %s186
      %s188 = smul.addr %s187, 8
      %s189 = scalar_lea.vmem %s3, %s188
      %s190 = smul.u32 2, %s19
      %p191 = scmp.lt.s32.totalorder %s18, 1
      %s192 = scalar_select %p191, %s18, 1
      %p193 = scmp.lt.s32.totalorder %s190, 1
      %s194 = scalar_select %p193, %s190, 1
      %s195 = smul.addr %s192, 2
      %s196 = sadd.s32 %s194, %s195
      %s197 = smul.addr %s196, 8
      %s198 = scalar_lea.vmem %s0, %s197
      %s199 = smul.u32 2, %s19
      %s200 = smul.u32 2, %s19
      %p201 = scmp.lt.s32.totalorder %s18, 1
      %s202 = scalar_select %p201, %s18, 1
      %p203 = scmp.lt.s32.totalorder %s200, 1
      %s204 = scalar_select %p203, %s200, 1
      %s205 = smul.addr %s202, 2
      %s206 = sadd.s32 %s204, %s205
      %s207 = smul.addr %s206, 8
      %s208 = scalar_lea.vmem %s3, %s207
      %s209 = smul.u32 2, %s19
      %v210 = vld [vmem:[%s198] sm:$0xff]
      %v211 = vld [vmem:[%s198 + $0x8] sm:$0xff]
      %v212 = vld [vmem:[%s1] sm:$0xff]
      %214 = vset.pattern.permute.xlu0 0
      %215 = vperm.xlu0 %214, %v212
      %v216 = vpop.permute.xlu0 %215
      %v218 = vmul.f32 %v210, %v216
      %v219 = vmul.f32 %v211, %v216
      %v220 = vld [vmem:[%s2] sm:$0xff]
      %222 = vset.pattern.permute.xlu0 0
      %223 = vperm.xlu0 %222, %v220
      %v224 = vpop.permute.xlu0 %223
      %v226 = vadd.f32 %v218, %v224
      %v227 = vadd.f32 %v219, %v224
      %v228 = vmax.f32 %v226, 0.0
      %v229 = vmax.f32 %v227, 0.0
      %230 = vst [vmem:[%s208] sm:$0xff] %v228
      %231 = vst [vmem:[%s208 + $0x8] sm:$0xff] %v229
      %s232 = smul.u32 2, %s19
      %p233 = scmp.lt.s32.totalorder %s18, 1
      %s234 = scalar_select %p233, %s18, 1
      %p235 = scmp.lt.s32.totalorder %s232, 1
      %s236 = scalar_select %p235, %s232, 1
      %s237 = smul.addr %s234, 2
      %s238 = sadd.s32 %s236, %s237
      %s239 = smul.addr %s238, 8
      %s240 = scalar_lea.vmem %s3, %s239
      // Predicated region
      $region33: #{encoder_block_forward.4} parent=31 // pred_check
        %p241 = pneg %p116
      $region34: #{encoder_block_forward.4} parent=31 // pred_check_branch
        %243 = sbr.rel (%p241) target = $region36
      $region35: #{encoder_block_forward.4} parent=31 // pred_region
        %s244 = smul.u32 2, %s19
      $region36: #{encoder_block_forward.4} parent=31 // pred_fallthru
        _
    $region32: #{encoder_block_forward.4} parent=5 // pred_fallthru
      _
    %p245 = scmp.le.s32.totalorder 2, %s9
    // Predicated region
    $region37: #{encoder_block_forward.4} parent=5 // pred_check
      %p246 = pneg %p245
    $region38: #{encoder_block_forward.4} parent=5 // pred_check_branch
      %248 = sbr.rel (%p246) target = $region40
    $region39: #{encoder_block_forward.4} parent=5 // pred_region
      %s249 = ssub.s32 %s9, 2
      // Predicated region
      $region41: #{encoder_block_forward.4} parent=39 // pred_check
        %p250 = pneg %p122
      $region42: #{encoder_block_forward.4} parent=39 // pred_check_branch
        %252 = sbr.rel (%p250) target = $region44
      $region43: #{encoder_block_forward.4} parent=39 // pred_region
        %s253 = smul.u32 2, %s21
        %p254 = scmp.lt.s32.totalorder %s20, 1
        %s255 = scalar_select %p254, %s20, 1
        %p256 = scmp.lt.s32.totalorder %s253, 1
        %s257 = scalar_select %p256, %s253, 1
        %s258 = smul.addr %s255, 2
        %s259 = sadd.s32 %s257, %s258
        %s260 = smul.addr %s259, 8
        %s261 = scalar_lea.vmem %s3, %s260
      $region44: #{encoder_block_forward.4} parent=39 // pred_fallthru
        _
    $region40: #{encoder_block_forward.4} parent=5 // pred_fallthru
      _
  $region6: #{encoder_block_forward.4} parent=0 // loop_footer
    %s13 = sadd.s32 1, %s9
  $region7: #{encoder_block_forward.4} parent=0 // loop_footer_branch
    %8 = sbr.rel target = $region3
  $region8: #{encoder_block_forward.4} parent=0 // loop_exit
    _

// kernel: encoder_block_forward.3
$region0: #{encoder_block_forward.3}
  #allocation0 [shape = 'u32[]', space=smem, size = 0x4, offset = 0x4, fixed_abs, tag = 'smem constant byte address 0x4 - core index']
  #allocation1 [shape = 'u32[144,128]{1,0:T(1,128)}', space=vmem, size = 0x12000, scoped, tag = 'internal scratch']
  %s0 = inlined_call_operand.vmem [shape: f32[2,36,256], index: 0, kind: input, shape index: {}]
  %s1 = inlined_call_operand.vmem [shape: f32[8,36], index: 1, kind: input, shape index: {}]
  %s2 = inlined_call_operand.vmem [shape: f32[8,1], index: 2, kind: input, shape index: {}]
  %s3 = inlined_call_operand.vmem [shape: f32[2,8,256], index: 3, kind: output, shape index: {0}]
  %s4 = inlined_call_operand.vmem [shape: f32[2,1,8,1], index: 4, kind: output, shape index: {1}]
  %s5 = inlined_call_operand.vmem [shape: f32[2,1,8,1], index: 5, kind: output, shape index: {2}]
  %6 = xla_tuple %s3, %s4, %s5
  %s7 = sld [smem:[#allocation0]]
  $region61: #{encoder_block_forward.3} parent=0
    _
  %s9 = ssub.s32 1, %s7
  %s10 = scalar_select 0, %s9, %s7
  loop: start=0, step=1, limit=4
  $region2: #{encoder_block_forward.3} parent=0 // loop_pre_header
    _
  $region3: #{encoder_block_forward.3} parent=0 // loop_header
    %s12 = sphi 0, %s16
    %p13 = scmp.ge.s32.totalorder %s12, 4
    %s19 = sphi 0, %s31
    %s20 = sphi 0, %s27
    %s21 = sphi 0, %s19
    %s22 = sphi 0, %s20
    %s23 = sphi 0, %s21
    %s24 = sphi 0, %s22
    %s36 = sphi 0, %s38
    %s39 = sphi 0, %s36
    %s40 = sphi 0, %s39
    %s56 = sphi 0, %s40
    %s60 = sphi 0, %s60
    %s62 = sphi 0, %s60
    %s63 = sphi 0, %s62
    %s77 = sphi 0, %s63
    %s81 = sphi 0, %s81
    %s83 = sphi 0, %s81
    %s84 = sphi 0, %s83
    %s98 = sphi 0, %s84
    %s106 = sphi 0, %s108
    %s109 = sphi 0, %s106
    %s110 = sphi 0, %s109
    %s126 = sphi 0, %s110
    %s134 = sphi 0, %s136
    %s137 = sphi 0, %s134
    %s138 = sphi 0, %s137
    %s154 = sphi 0, %s138
    %s162 = sphi 0, %s164
    %s165 = sphi 0, %s162
    %s166 = sphi 0, %s165
    %s182 = sphi 0, %s166
  $region4: #{encoder_block_forward.3} parent=0 // loop_header_branch
    %15 = sbr.rel (%p13) target = $region8
  $region5: #{encoder_block_forward.3} parent=0 // loop_body
    %s17 = ssub.s32 %s12, 1
    %s18 = ssub.s32 %s12, 2
    %s25 = sadd.s32 1, %s20
    %p26 = scmp.ge.s32.totalorder %s25, 1
    %s27 = scalar_select %p26, 0, %s25
    %s28 = sadd.s32 1, %s19
    %s29 = scalar_select %p26, %s28, %s19
    %p30 = scmp.ge.s32.totalorder %s29, 2
    %s31 = scalar_select %p30, 0, %s29
    %s32 = ssub.s32 %s19, %s31
    %s33 = ssub.s32 %s20, %s27
    %s34 = sor.u32 %s32, %s33
    %p35 = scmp.eq.s32.totalorder %s34, 0
    %s37 = sadd.s32 %s36, 1
    %s38 = scalar_select %p35, %s36, %s37
    %p41 = pneg %p35
    %p42 = scmp.eq.s32.totalorder %s12, 1
    %p43 = por %p41, %p42
    %p44 = scmp.ne.s32.totalorder %s36, %s39
    %p45 = scmp.eq.s32.totalorder %s12, 0
    %p46 = por %p44, %p45
    %p47 = scmp.ne.s32.totalorder %s36, %s39
    %p48 = scmp.eq.s32.totalorder %s17, 1
    %p49 = por %p47, %p48
    %p50 = scmp.ne.s32.totalorder %s39, %s40
    %p51 = scmp.eq.s32.totalorder %s17, 0
    %p52 = por %p50, %p51
    %p53 = scmp.ne.s32.totalorder %s39, %s40
    %p54 = scmp.eq.s32.totalorder %s18, 1
    %p55 = por %p53, %p54
    %p57 = scmp.ne.s32.totalorder %s40, %s56
    %p58 = scmp.eq.s32.totalorder %s18, 0
    %p59 = por %p57, %p58
    %s61 = sadd.s32 %s60, 1
    %p64 = scmp.eq.s32.totalorder %s12, 1
    %p65 = scmp.ne.s32.totalorder %s60, %s62
    %p66 = scmp.eq.s32.totalorder %s12, 0
    %p67 = por %p65, %p66
    %p68 = scmp.ne.s32.totalorder %s60, %s62
    %p69 = scmp.eq.s32.totalorder %s17, 1
    %p70 = por %p68, %p69
    %p71 = scmp.ne.s32.totalorder %s62, %s63
    %p72 = scmp.eq.s32.totalorder %s17, 0
    %p73 = por %p71, %p72
    %p74 = scmp.ne.s32.totalorder %s62, %s63
    %p75 = scmp.eq.s32.totalorder %s18, 1
    %p76 = por %p74, %p75
    %p78 = scmp.ne.s32.totalorder %s63, %s77
    %p79 = scmp.eq.s32.totalorder %s18, 0
    %p80 = por %p78, %p79
    %s82 = sadd.s32 %s81, 1
    %p85 = scmp.eq.s32.totalorder %s12, 1
    %p86 = scmp.ne.s32.totalorder %s81, %s83
    %p87 = scmp.eq.s32.totalorder %s12, 0
    %p88 = por %p86, %p87
    %p89 = scmp.ne.s32.totalorder %s81, %s83
    %p90 = scmp.eq.s32.totalorder %s17, 1
    %p91 = por %p89, %p90
    %p92 = scmp.ne.s32.totalorder %s83, %s84
    %p93 = scmp.eq.s32.totalorder %s17, 0
    %p94 = por %p92, %p93
    %p95 = scmp.ne.s32.totalorder %s83, %s84
    %p96 = scmp.eq.s32.totalorder %s18, 1
    %p97 = por %p95, %p96
    %p99 = scmp.ne.s32.totalorder %s84, %s98
    %p100 = scmp.eq.s32.totalorder %s18, 0
    %p101 = por %p99, %p100
    %s102 = ssub.s32 %s19, %s31
    %s103 = ssub.s32 %s20, %s27
    %s104 = sor.u32 %s102, %s103
    %p105 = scmp.eq.s32.totalorder %s104, 0
    %s107 = sadd.s32 %s106, 1
    %s108 = scalar_select %p105, %s106, %s107
    %p111 = pneg %p105
    %p112 = scmp.eq.s32.totalorder %s12, 1
    %p113 = por %p111, %p112
    %p114 = scmp.ne.s32.totalorder %s106, %s109
    %p115 = scmp.eq.s32.totalorder %s12, 0
    %p116 = por %p114, %p115
    %p117 = scmp.ne.s32.totalorder %s106, %s109
    %p118 = scmp.eq.s32.totalorder %s17, 1
    %p119 = por %p117, %p118
    %p120 = scmp.ne.s32.totalorder %s109, %s110
    %p121 = scmp.eq.s32.totalorder %s17, 0
    %p122 = por %p120, %p121
    %p123 = scmp.ne.s32.totalorder %s109, %s110
    %p124 = scmp.eq.s32.totalorder %s18, 1
    %p125 = por %p123, %p124
    %p127 = scmp.ne.s32.totalorder %s110, %s126
    %p128 = scmp.eq.s32.totalorder %s18, 0
    %p129 = por %p127, %p128
    %s130 = ssub.s32 %s19, %s31
    %s131 = ssub.s32 %s20, %s27
    %s132 = sor.u32 %s130, %s131
    %p133 = scmp.eq.s32.totalorder %s132, 0
    %s135 = sadd.s32 %s134, 1
    %s136 = scalar_select %p133, %s134, %s135
    %p139 = pneg %p133
    %p140 = scmp.eq.s32.totalorder %s12, 1
    %p141 = por %p139, %p140
    %p142 = scmp.ne.s32.totalorder %s134, %s137
    %p143 = scmp.eq.s32.totalorder %s12, 0
    %p144 = por %p142, %p143
    %p145 = scmp.ne.s32.totalorder %s134, %s137
    %p146 = scmp.eq.s32.totalorder %s17, 1
    %p147 = por %p145, %p146
    %p148 = scmp.ne.s32.totalorder %s137, %s138
    %p149 = scmp.eq.s32.totalorder %s17, 0
    %p150 = por %p148, %p149
    %p151 = scmp.ne.s32.totalorder %s137, %s138
    %p152 = scmp.eq.s32.totalorder %s18, 1
    %p153 = por %p151, %p152
    %p155 = scmp.ne.s32.totalorder %s138, %s154
    %p156 = scmp.eq.s32.totalorder %s18, 0
    %p157 = por %p155, %p156
    %s158 = ssub.s32 %s19, %s31
    %s159 = ssub.s32 %s20, %s27
    %s160 = sor.u32 %s158, %s159
    %p161 = scmp.eq.s32.totalorder %s160, 0
    %s163 = sadd.s32 %s162, 1
    %s164 = scalar_select %p161, %s162, %s163
    %p167 = pneg %p161
    %p168 = scmp.eq.s32.totalorder %s12, 1
    %p169 = por %p167, %p168
    %p170 = scmp.ne.s32.totalorder %s162, %s165
    %p171 = scmp.eq.s32.totalorder %s12, 0
    %p172 = por %p170, %p171
    %p173 = scmp.ne.s32.totalorder %s162, %s165
    %p174 = scmp.eq.s32.totalorder %s17, 1
    %p175 = por %p173, %p174
    %p176 = scmp.ne.s32.totalorder %s165, %s166
    %p177 = scmp.eq.s32.totalorder %s17, 0
    %p178 = por %p176, %p177
    %p179 = scmp.ne.s32.totalorder %s165, %s166
    %p180 = scmp.eq.s32.totalorder %s18, 1
    %p181 = por %p179, %p180
    %p183 = scmp.ne.s32.totalorder %s166, %s182
    %p184 = scmp.eq.s32.totalorder %s18, 0
    %p185 = por %p183, %p184
    %p186 = scmp.le.s32.totalorder 1, %s12
    %p187 = scmp.lt.s32.totalorder %s12, 3
    %p188 = pnand %p186, %p187
    %p189 = pneg %p188
    // Predicated region
    $region9: #{encoder_block_forward.3} parent=5 // pred_check
      _
    $region10: #{encoder_block_forward.3} parent=5 // pred_check_branch
      %191 = sbr.rel (%p188) target = $region12
    $region11: #{encoder_block_forward.3} parent=5 // pred_region
      %s192 = ssub.s32 %s12, 1
      // Predicated region
      $region13: #{encoder_block_forward.3} parent=11 // pred_check
        %p193 = pneg %p73
      $region14: #{encoder_block_forward.3} parent=11 // pred_check_branch
        %195 = sbr.rel (%p193) target = $region16
      $region15: #{encoder_block_forward.3} parent=11 // pred_region
        _
      $region16: #{encoder_block_forward.3} parent=11 // pred_fallthru
        _
      // Predicated region
      $region17: #{encoder_block_forward.3} parent=11 // pred_check
        %p196 = pneg %p94
      $region18: #{encoder_block_forward.3} parent=11 // pred_check_branch
        %198 = sbr.rel (%p196) target = $region20
      $region19: #{encoder_block_forward.3} parent=11 // pred_region
        _
      $region20: #{encoder_block_forward.3} parent=11 // pred_fallthru
        _
    $region12: #{encoder_block_forward.3} parent=5 // pred_fallthru
      _
    %p199 = scmp.lt.s32.totalorder %s12, 2
    // Predicated region
    $region21: #{encoder_block_forward.3} parent=5 // pred_check
      %p200 = pneg %p199
    $region22: #{encoder_block_forward.3} parent=5 // pred_check_branch
      %202 = sbr.rel (%p200) target = $region24
    $region23: #{encoder_block_forward.3} parent=5 // pred_region
      // Predicated region
      $region25: #{encoder_block_forward.3} parent=23 // pred_check
        %p203 = pneg %p46
      $region26: #{encoder_block_forward.3} parent=23 // pred_check_branch
        %205 = sbr.rel (%p203) target = $region28
      $region27: #{encoder_block_forward.3} parent=23 // pred_region
        %s206 = smul.u32 2, %s20
        %p207 = scmp.lt.s32.totalorder %s19, 1
        %s208 = scalar_select %p207, %s19, 1
        %p209 = scmp.lt.s32.totalorder %s206, 1
        %s210 = scalar_select %p209, %s206, 1
        %s211 = smul.addr %s208, 10
        %s212 = sadd.s32 %s210, %s211
        %s213 = smul.addr %s212, 8
        %s214 = scalar_lea.vmem %s0, %s213
        %s215 = smul.u32 2, %s20
      $region28: #{encoder_block_forward.3} parent=23 // pred_fallthru
        _
    $region24: #{encoder_block_forward.3} parent=5 // pred_fallthru
      _
    %p216 = scmp.le.s32.totalorder 1, %s12
    %p217 = scmp.lt.s32.totalorder %s12, 3
    %p218 = pnand %p216, %p217
    %p219 = pneg %p218
    // Predicated region
    $region29: #{encoder_block_forward.3} parent=5 // pred_check
      _
    $region30: #{encoder_block_forward.3} parent=5 // pred_check_branch
      %221 = sbr.rel (%p218) target = $region32
    $region31: #{encoder_block_forward.3} parent=5 // pred_region
      %s222 = ssub.s32 %s12, 1
      %s223 = smul.u32 2, %s22
      %p224 = scmp.lt.s32.totalorder %s21, 1
      %s225 = scalar_select %p224, %s21, 1
      %p226 = scmp.lt.s32.totalorder %s223, 1
      %s227 = scalar_select %p226, %s223, 1
      %s228 = smul.addr %s225, 10
      %s229 = sadd.s32 %s227, %s228
      %s230 = smul.addr %s229, 8
      %s231 = scalar_lea.vmem %s0, %s230
      %p232 = pneg %p52
      %p233 = pneg %p49
      %p234 = pneg %p73
      %p235 = pneg %p70
      %p236 = pneg %p94
      %p237 = pneg %p91
      %p238 = pneg %p122
      %p239 = pneg %p119
      %s240 = smul.u32 2, %s22
      %p241 = scmp.lt.s32.totalorder %s21, 1
      %s242 = scalar_select %p241, %s21, 1
      %p243 = scmp.lt.s32.totalorder %s240, 1
      %s244 = scalar_select %p243, %s240, 1
      %s245 = smul.addr %s242, 2
      %s246 = sadd.s32 %s244, %s245
      %s247 = smul.addr %s246, 8
      %s248 = scalar_lea.vmem %s3, %s247
      %p249 = pneg %p150
      %p250 = pneg %p147
      %p251 = scmp.lt.s32.totalorder %s21, 1
      %s252 = scalar_select %p251, %s21, 1
      %p253 = scmp.lt.s32.totalorder %s22, 0
      %s254 = scalar_select %p253, %s22, 0
      %s255 = sadd.s32 %s254, %s252
      %s256 = smul.addr %s255, 8
      %s257 = scalar_lea.vmem %s4, %s256
      %p258 = pneg %p178
      %p259 = pneg %p175
      %p260 = scmp.lt.s32.totalorder %s21, 1
      %s261 = scalar_select %p260, %s21, 1
      %p262 = scmp.lt.s32.totalorder %s22, 0
      %s263 = scalar_select %p262, %s22, 0
      %s264 = sadd.s32 %s263, %s261
      %s265 = smul.addr %s264, 8
      %s266 = scalar_lea.vmem %s5, %s265
      %s267 = smul.u32 2, %s22
      %p268 = scmp.lt.s32.totalorder %s21, 1
      %s269 = scalar_select %p268, %s21, 1
      %p270 = scmp.lt.s32.totalorder %s267, 1
      %s271 = scalar_select %p270, %s267, 1
      %s272 = smul.addr %s269, 10
      %s273 = sadd.s32 %s271, %s272
      %s274 = smul.addr %s273, 8
      %s275 = scalar_lea.vmem %s0, %s274
      %s276 = smul.u32 2, %s22
      %s277 = smul.u32 2, %s22
      %p278 = scmp.lt.s32.totalorder %s21, 1
      %s279 = scalar_select %p278, %s21, 1
      %p280 = scmp.lt.s32.totalorder %s277, 1
      %s281 = scalar_select %p280, %s277, 1
      %s282 = smul.addr %s279, 2
      %s283 = sadd.s32 %s281, %s282
      %s284 = smul.addr %s283, 8
      %s285 = scalar_lea.vmem %s3, %s284
      %s286 = smul.u32 2, %s22
      %p287 = scmp.lt.s32.totalorder %s21, 1
      %s288 = scalar_select %p287, %s21, 1
      %p289 = scmp.lt.s32.totalorder %s22, 0
      %s290 = scalar_select %p289, %s22, 0
      %s291 = sadd.s32 %s290, %s288
      %s292 = smul.addr %s291, 8
      %s293 = scalar_lea.vmem %s4, %s292
      %p294 = scmp.lt.s32.totalorder %s21, 1
      %s295 = scalar_select %p294, %s21, 1
      %p296 = scmp.lt.s32.totalorder %s22, 0
      %s297 = scalar_select %p296, %s22, 0
      %s298 = sadd.s32 %s297, %s295
      %s299 = smul.addr %s298, 8
      %s300 = scalar_lea.vmem %s5, %s299
      %v301 = vld [vmem:[%s1] sm:$0xff]
      %v302 = vld [vmem:[%s275] sm:$0xff]
      %v303 = vld [vmem:[%s275 + $0x8] sm:$0xff]
      %v304 = vld [vmem:[%s275 + $0x10] sm:$0xff]
      %v305 = vld [vmem:[%s275 + $0x18] sm:$0xff]
      %v306 = vld [vmem:[%s275 + $0x20] sm:$0xff]
      %v307 = vld [vmem:[%s275 + $0x28] sm:$0xff]
      %v308 = vld [vmem:[%s275 + $0x30] sm:$0xff]
      %v309 = vld [vmem:[%s275 + $0x38] sm:$0xff]
      %v310 = vld [vmem:[%s275 + $0x40] sm:$0xf]
      %v311 = vld [vmem:[%s275 + $0x48] sm:$0xf]
      %v312 = vld [vmem:[%s2] sm:$0xff]
      %314 = vset.pattern.permute.xlu0 0
      %315 = vperm.xlu0 %314, %v312
      %v316 = vpop.permute.xlu0 %315
      %vm318 = vcmask 293888
      %v320 = vsel %vm318, %v301, 0
      %vm322 = vcmask 1043456
      %v324 = vsel %vm322, %v310, 0
      %v327 = vsel %vm322, %v311, 0
      %329 = vmatprep.subr.mxu0 %v303
      %330 = vmatpush1.msra.mxu0 %v302
      %331 = vmatprep.subr.mxu0 %v305
      %332 = vmatpush1.msra.mxu0 %v304
      %333 = vmatprep.subr.mxu0 %v307
      %334 = vmatpush1.msra.mxu0 %v306
      %335 = vmatprep.subr.mxu0 %v309
      %336 = vmatpush1.msra.mxu0 %v308
      %337 = vmatprep.subr.mxu0 %v327
      %338 = vmatpush1.msra.mxu0 %v324
      %339 = vmatprep.subr.mxu0 0.0
      %340 = vmatpush1.msra.mxu0 0.0
      %341 = vmatprep.subr.mxu0 0.0
      %342 = vmatpush1.msra.mxu0 0.0
      %343 = vmatprep.subr.mxu0 0.0
      %344 = vmatpush1.msra.mxu0 0.0
      %345 = vmatprep.subr.mxu0 0.0
      %346 = vmatpush1.msra.mxu0 0.0
      %347 = vmatprep.subr.mxu0 0.0
      %348 = vmatpush1.msra.mxu0 0.0
      %349 = vmatprep.subr.mxu0 0.0
      %350 = vmatpush1.msra.mxu0 0.0
      %351 = vmatprep.subr.mxu0 0.0
      %352 = vmatpush1.msra.mxu0 0.0
      %353 = vmatprep.subr.mxu0 0.0
      %354 = vmatpush1.msra.mxu0 0.0
      %355 = vmatprep.subr.mxu0 0.0
      %356 = vmatpush1.msra.mxu0 0.0
      %357 = vmatprep.subr.mxu0 0.0
      %358 = vmatpush1.msra.mxu0 0.0
      %359 = vmatprep.subr.mxu0 0.0
      %360 = vmatpush1.msra.mxu0 0.0
      %361 = vmatprep.subr.mxu0 0.0
      %362 = vmatpush1.msra.mxu0 0.0
      %363 = vmatprep.subr.mxu0 0.0
      %364 = vmatpush1.msra.mxu0 0.0
      %365 = vmatprep.subr.mxu0 0.0
      %366 = vmatpush1.msra.mxu0 0.0
      %367 = vmatprep.subr.mxu0 0.0
      %368 = vmatpush1.msra.mxu0 0.0
      %369 = vmatprep.subr.mxu0 0.0
      %370 = vmatpush1.msra.mxu0 0.0
      %371 = vmatprep.subr.mxu0 0.0
      %372 = vmatpush1.msra.mxu0 0.0
      %373 = vmatprep.subr.mxu0 0.0
      %374 = vmatpush1.msra.mxu0 0.0
      %375 = vmatprep.subr.mxu0 0.0
      %376 = vmatpush1.msra.mxu0 0.0
      %377 = vmatprep.subr.mxu0 0.0
      %378 = vmatpush1.msra.mxu0 0.0
      %379 = vmatprep.subr.mxu0 0.0
      %380 = vmatpush1.msra.mxu0 0.0
      %381 = vmatprep.subr.mxu0 0.0
      %382 = vmatpush1.msra.mxu0 0.0
      %383 = vmatprep.subr.mxu0 0.0
      %384 = vmatpush1.msra.mxu0 0.0
      %385 = vmatprep.subr.mxu0 0.0
      %386 = vmatpush1.msra.mxu0 0.0
      %387 = vmatprep.subr.mxu0 0.0
      %388 = vmatpush1.msra.mxu0 0.0
      %389 = vmatprep.subr.mxu0 0.0
      %390 = vmatpush1.msra.mxu0 0.0
      %391 = vmatprep.subr.mxu0 0.0
      %392 = vmatpush1.msra.mxu0 0.0
      %393 = vmatprep.mubr.f32.mxu0 0.0
      %394 = vmatmul.mubr.f32.gmra.mrb[0].mxu0 %v320
      %v395 = vpop.f32.mrb[0].mxu0
      %v396 = vadd.f32 %v316, %v395
      %v397 = vpop.f32.mrb[0].mxu0
      %v398 = vadd.f32 %v316, %v397
      %399 = vdwg.mxu0
      %400 = vst [vmem:[%s285] sm:$0xff] %v396
      %401 = vst [vmem:[%s285 + $0x8] sm:$0xff] %v398
      %v402 = vadd.f32 %v396, %v398
      %403 = vadd.xlane.f32.xlu0 %v402
      %v404 = vpop.xlane.xlu0 %403
      %vm405 = vcmask 7168
      %406 = vst.msk [vmem:[%s293] sm:$0xff] %vm405, %v404
      %v407 = vmul.f32 %v396, %v396
      %v408 = vmul.f32 %v398, %v398
      %v409 = vadd.f32 %v407, %v408
      %410 = vadd.xlane.f32.xlu0 %v409
      %v411 = vpop.xlane.xlu0 %410
      %412 = vst.msk [vmem:[%s300] sm:$0xff] %vm405, %v411
      %s413 = smul.u32 2, %s22
      %p414 = scmp.lt.s32.totalorder %s21, 1
      %s415 = scalar_select %p414, %s21, 1
      %p416 = scmp.lt.s32.totalorder %s413, 1
      %s417 = scalar_select %p416, %s413, 1
      %s418 = smul.addr %s415, 2
      %s419 = sadd.s32 %s417, %s418
      %s420 = smul.addr %s419, 8
      %s421 = scalar_lea.vmem %s3, %s420
      %p422 = scmp.lt.s32.totalorder %s21, 1
      %s423 = scalar_select %p422, %s21, 1
      %p424 = scmp.lt.s32.totalorder %s22, 0
      %s425 = scalar_select %p424, %s22, 0
      %s426 = sadd.s32 %s425, %s423
      %s427 = smul.addr %s426, 8
      %s428 = scalar_lea.vmem %s4, %s427
      %p429 = scmp.lt.s32.totalorder %s21, 1
      %s430 = scalar_select %p429, %s21, 1
      %p431 = scmp.lt.s32.totalorder %s22, 0
      %s432 = scalar_select %p431, %s22, 0
      %s433 = sadd.s32 %s432, %s430
      %s434 = smul.addr %s433, 8
      %s435 = scalar_lea.vmem %s5, %s434
      // Predicated region
      $region33: #{encoder_block_forward.3} parent=31 // pred_check
        %p436 = pneg %p119
      $region34: #{encoder_block_forward.3} parent=31 // pred_check_branch
        %438 = sbr.rel (%p436) target = $region36
      $region35: #{encoder_block_forward.3} parent=31 // pred_region
        %s439 = smul.u32 2, %s22
      $region36: #{encoder_block_forward.3} parent=31 // pred_fallthru
        _
      // Predicated region
      $region37: #{encoder_block_forward.3} parent=31 // pred_check
        %p440 = pneg %p147
      $region38: #{encoder_block_forward.3} parent=31 // pred_check_branch
        %442 = sbr.rel (%p440) target = $region40
      $region39: #{encoder_block_forward.3} parent=31 // pred_region
        _
      $region40: #{encoder_block_forward.3} parent=31 // pred_fallthru
        _
      // Predicated region
      $region41: #{encoder_block_forward.3} parent=31 // pred_check
        %p443 = pneg %p175
      $region42: #{encoder_block_forward.3} parent=31 // pred_check_branch
        %445 = sbr.rel (%p443) target = $region44
      $region43: #{encoder_block_forward.3} parent=31 // pred_region
        _
      $region44: #{encoder_block_forward.3} parent=31 // pred_fallthru
        _
    $region32: #{encoder_block_forward.3} parent=5 // pred_fallthru
      _
    %p446 = scmp.le.s32.totalorder 2, %s12
    // Predicated region
    $region45: #{encoder_block_forward.3} parent=5 // pred_check
      %p447 = pneg %p446
    $region46: #{encoder_block_forward.3} parent=5 // pred_check_branch
      %449 = sbr.rel (%p447) target = $region48
    $region47: #{encoder_block_forward.3} parent=5 // pred_region
      %s450 = ssub.s32 %s12, 2
      // Predicated region
      $region49: #{encoder_block_forward.3} parent=47 // pred_check
        %p451 = pneg %p125
      $region50: #{encoder_block_forward.3} parent=47 // pred_check_branch
        %453 = sbr.rel (%p451) target = $region52
      $region51: #{encoder_block_forward.3} parent=47 // pred_region
        %s454 = smul.u32 2, %s24
        %p455 = scmp.lt.s32.totalorder %s23, 1
        %s456 = scalar_select %p455, %s23, 1
        %p457 = scmp.lt.s32.totalorder %s454, 1
        %s458 = scalar_select %p457, %s454, 1
        %s459 = smul.addr %s456, 2
        %s460 = sadd.s32 %s458, %s459
        %s461 = smul.addr %s460, 8
        %s462 = scalar_lea.vmem %s3, %s461
      $region52: #{encoder_block_forward.3} parent=47 // pred_fallthru
        _
      // Predicated region
      $region53: #{encoder_block_forward.3} parent=47 // pred_check
        %p463 = pneg %p153
      $region54: #{encoder_block_forward.3} parent=47 // pred_check_branch
        %465 = sbr.rel (%p463) target = $region56
      $region55: #{encoder_block_forward.3} parent=47 // pred_region
        %p466 = scmp.lt.s32.totalorder %s23, 1
        %s467 = scalar_select %p466, %s23, 1
        %p468 = scmp.lt.s32.totalorder %s24, 0
        %s469 = scalar_select %p468, %s24, 0
        %s470 = sadd.s32 %s469, %s467
        %s471 = smul.addr %s470, 8
        %s472 = scalar_lea.vmem %s4, %s471
      $region56: #{encoder_block_forward.3} parent=47 // pred_fallthru
        _
      // Predicated region
      $region57: #{encoder_block_forward.3} parent=47 // pred_check
        %p473 = pneg %p181
      $region58: #{encoder_block_forward.3} parent=47 // pred_check_branch
        %475 = sbr.rel (%p473) target = $region60
      $region59: #{encoder_block_forward.3} parent=47 // pred_region
        %p476 = scmp.lt.s32.totalorder %s23, 1
        %s477 = scalar_select %p476, %s23, 1
        %p478 = scmp.lt.s32.totalorder %s24, 0
        %s479 = scalar_select %p478, %s24, 0
        %s480 = sadd.s32 %s479, %s477
        %s481 = smul.addr %s480, 8
        %s482 = scalar_lea.vmem %s5, %s481
      $region60: #{encoder_block_forward.3} parent=47 // pred_fallthru
        _
    $region48: #{encoder_block_forward.3} parent=5 // pred_fallthru
      _
  $region6: #{encoder_block_forward.3} parent=0 // loop_footer
    %s16 = sadd.s32 1, %s12
  $region7: #{encoder_block_forward.3} parent=0 // loop_footer_branch
    %11 = sbr.rel target = $region3
  $region8: #{encoder_block_forward.3} parent=0 // loop_exit
    _

// kernel: encoder_block_forward.5
$region0: #{encoder_block_forward.5}
  #allocation0 [shape = 'u32[]', space=smem, size = 0x4, offset = 0x4, fixed_abs, tag = 'smem constant byte address 0x4 - core index']
  #allocation1 [shape = 'u32[144,128]{1,0:T(1,128)}', space=vmem, size = 0x12000, scoped, tag = 'internal scratch']
  %s0 = inlined_call_operand.vmem [shape: f32[128,2,8,2], index: 0, kind: input, shape index: {}]
  %s1 = inlined_call_operand.hbm [shape: f32[128,8], index: 1, kind: output, shape index: {}]
  %s2 = sld [smem:[#allocation0]]
  $region14: #{encoder_block_forward.5} parent=0
    _
  %s4 = ssub.s32 1, %s2
  %s5 = scalar_select 0, %s4, %s2
  $region1: #{encoder_block_forward.5} parent=0
    #allocation2 [shape = 'u8[65536]{0}', space=vmem, size = 0x10000, scoped, tag = 'output window, operand 0, single buffered']
    #allocation3 [shape = 's32[1]{0}', space=sflag, size = 0x4, scoped, tag = 'scoped memory for encoder_block_forward.5']
    %6 = vsyncpa [#allocation3], 0
    // Predicated region
    $region2: #{encoder_block_forward.5} parent=1 // pred_check
      _
    $region3: #{encoder_block_forward.5} parent=1 // pred_check_branch
      %8 = sbr.rel (0) target = $region5
    $region4: #{encoder_block_forward.5} parent=1 // pred_region
      _
    $region5: #{encoder_block_forward.5} parent=1 // pred_fallthru
      _
    %v9 = vld [vmem:[%s0] sm:$0xff]
    %v10 = vld [vmem:[%s0 + $0x8] sm:$0xff]
    %v11 = vld [vmem:[%s0 + $0x10] sm:$0xff]
    %v12 = vld [vmem:[%s0 + $0x18] sm:$0xff]
    %v13 = vld [vmem:[%s0 + $0x20] sm:$0xff]
    %v14 = vld [vmem:[%s0 + $0x28] sm:$0xff]
    %v15 = vld [vmem:[%s0 + $0x30] sm:$0xff]
    %v16 = vld [vmem:[%s0 + $0x38] sm:$0xff]
    %v17 = vld [vmem:[%s0 + $0x40] sm:$0xff]
    %v18 = vld [vmem:[%s0 + $0x48] sm:$0xff]
    %v19 = vld [vmem:[%s0 + $0x50] sm:$0xff]
    %v20 = vld [vmem:[%s0 + $0x58] sm:$0xff]
    %v21 = vld [vmem:[%s0 + $0x60] sm:$0xff]
    %v22 = vld [vmem:[%s0 + $0x68] sm:$0xff]
    %v23 = vld [vmem:[%s0 + $0x70] sm:$0xff]
    %v24 = vld [vmem:[%s0 + $0x78] sm:$0xff]
    %v25 = vld [vmem:[%s0 + $0x80] sm:$0xff]
    %v26 = vld [vmem:[%s0 + $0x88] sm:$0xff]
    %v27 = vld [vmem:[%s0 + $0x90] sm:$0xff]
    %v28 = vld [vmem:[%s0 + $0x98] sm:$0xff]
    %v29 = vld [vmem:[%s0 + $0xa0] sm:$0xff]
    %v30 = vld [vmem:[%s0 + $0xa8] sm:$0xff]
    %v31 = vld [vmem:[%s0 + $0xb0] sm:$0xff]
    %v32 = vld [vmem:[%s0 + $0xb8] sm:$0xff]
    %v33 = vld [vmem:[%s0 + $0xc0] sm:$0xff]
    %v34 = vld [vmem:[%s0 + $0xc8] sm:$0xff]
    %v35 = vld [vmem:[%s0 + $0xd0] sm:$0xff]
    %v36 = vld [vmem:[%s0 + $0xd8] sm:$0xff]
    %v37 = vld [vmem:[%s0 + $0xe0] sm:$0xff]
    %v38 = vld [vmem:[%s0 + $0xe8] sm:$0xff]
    %v39 = vld [vmem:[%s0 + $0xf0] sm:$0xff]
    %v40 = vld [vmem:[%s0 + $0xf8] sm:$0xff]
    %v41 = vld [vmem:[%s0 + $0x100] sm:$0xff]
    %v42 = vld [vmem:[%s0 + $0x108] sm:$0xff]
    %v43 = vld [vmem:[%s0 + $0x110] sm:$0xff]
    %v44 = vld [vmem:[%s0 + $0x118] sm:$0xff]
    %v45 = vld [vmem:[%s0 + $0x120] sm:$0xff]
    %v46 = vld [vmem:[%s0 + $0x128] sm:$0xff]
    %v47 = vld [vmem:[%s0 + $0x130] sm:$0xff]
    %v48 = vld [vmem:[%s0 + $0x138] sm:$0xff]
    %v49 = vld [vmem:[%s0 + $0x140] sm:$0xff]
    %v50 = vld [vmem:[%s0 + $0x148] sm:$0xff]
    %v51 = vld [vmem:[%s0 + $0x150] sm:$0xff]
    %v52 = vld [vmem:[%s0 + $0x158] sm:$0xff]
    %v53 = vld [vmem:[%s0 + $0x160] sm:$0xff]
    %v54 = vld [vmem:[%s0 + $0x168] sm:$0xff]
    %v55 = vld [vmem:[%s0 + $0x170] sm:$0xff]
    %v56 = vld [vmem:[%s0 + $0x178] sm:$0xff]
    %v57 = vld [vmem:[%s0 + $0x180] sm:$0xff]
    %v58 = vld [vmem:[%s0 + $0x188] sm:$0xff]
    %v59 = vld [vmem:[%s0 + $0x190] sm:$0xff]
    %v60 = vld [vmem:[%s0 + $0x198] sm:$0xff]
    %v61 = vld [vmem:[%s0 + $0x1a0] sm:$0xff]
    %v62 = vld [vmem:[%s0 + $0x1a8] sm:$0xff]
    %v63 = vld [vmem:[%s0 + $0x1b0] sm:$0xff]
    %v64 = vld [vmem:[%s0 + $0x1b8] sm:$0xff]
    %v65 = vld [vmem:[%s0 + $0x1c0] sm:$0xff]
    %v66 = vld [vmem:[%s0 + $0x1c8] sm:$0xff]
    %v67 = vld [vmem:[%s0 + $0x1d0] sm:$0xff]
    %v68 = vld [vmem:[%s0 + $0x1d8] sm:$0xff]
    %v69 = vld [vmem:[%s0 + $0x1e0] sm:$0xff]
    %v70 = vld [vmem:[%s0 + $0x1e8] sm:$0xff]
    %v71 = vld [vmem:[%s0 + $0x1f0] sm:$0xff]
    %v72 = vld [vmem:[%s0 + $0x1f8] sm:$0xff]
    %v73 = vld [vmem:[%s0 + $0x200] sm:$0xff]
    %v74 = vld [vmem:[%s0 + $0x208] sm:$0xff]
    %v75 = vld [vmem:[%s0 + $0x210] sm:$0xff]
    %v76 = vld [vmem:[%s0 + $0x218] sm:$0xff]
    %v77 = vld [vmem:[%s0 + $0x220] sm:$0xff]
    %v78 = vld [vmem:[%s0 + $0x228] sm:$0xff]
    %v79 = vld [vmem:[%s0 + $0x230] sm:$0xff]
    %v80 = vld [vmem:[%s0 + $0x238] sm:$0xff]
    %v81 = vld [vmem:[%s0 + $0x240] sm:$0xff]
    %v82 = vld [vmem:[%s0 + $0x248] sm:$0xff]
    %v83 = vld [vmem:[%s0 + $0x250] sm:$0xff]
    %v84 = vld [vmem:[%s0 + $0x258] sm:$0xff]
    %v85 = vld [vmem:[%s0 + $0x260] sm:$0xff]
    %v86 = vld [vmem:[%s0 + $0x268] sm:$0xff]
    %v87 = vld [vmem:[%s0 + $0x270] sm:$0xff]
    %v88 = vld [vmem:[%s0 + $0x278] sm:$0xff]
    %v89 = vld [vmem:[%s0 + $0x280] sm:$0xff]
    %v90 = vld [vmem:[%s0 + $0x288] sm:$0xff]
    %v91 = vld [vmem:[%s0 + $0x290] sm:$0xff]
    %v92 = vld [vmem:[%s0 + $0x298] sm:$0xff]
    %v93 = vld [vmem:[%s0 + $0x2a0] sm:$0xff]
    %v94 = vld [vmem:[%s0 + $0x2a8] sm:$0xff]
    %v95 = vld [vmem:[%s0 + $0x2b0] sm:$0xff]
    %v96 = vld [vmem:[%s0 + $0x2b8] sm:$0xff]
    %v97 = vld [vmem:[%s0 + $0x2c0] sm:$0xff]
    %v98 = vld [vmem:[%s0 + $0x2c8] sm:$0xff]
    %v99 = vld [vmem:[%s0 + $0x2d0] sm:$0xff]
    %v100 = vld [vmem:[%s0 + $0x2d8] sm:$0xff]
    %v101 = vld [vmem:[%s0 + $0x2e0] sm:$0xff]
    %v102 = vld [vmem:[%s0 + $0x2e8] sm:$0xff]
    %v103 = vld [vmem:[%s0 + $0x2f0] sm:$0xff]
    %v104 = vld [vmem:[%s0 + $0x2f8] sm:$0xff]
    %v105 = vld [vmem:[%s0 + $0x300] sm:$0xff]
    %v106 = vld [vmem:[%s0 + $0x308] sm:$0xff]
    %v107 = vld [vmem:[%s0 + $0x310] sm:$0xff]
    %v108 = vld [vmem:[%s0 + $0x318] sm:$0xff]
    %v109 = vld [vmem:[%s0 + $0x320] sm:$0xff]
    %v110 = vld [vmem:[%s0 + $0x328] sm:$0xff]
    %v111 = vld [vmem:[%s0 + $0x330] sm:$0xff]
    %v112 = vld [vmem:[%s0 + $0x338] sm:$0xff]
    %v113 = vld [vmem:[%s0 + $0x340] sm:$0xff]
    %v114 = vld [vmem:[%s0 + $0x348] sm:$0xff]
    %v115 = vld [vmem:[%s0 + $0x350] sm:$0xff]
    %v116 = vld [vmem:[%s0 + $0x358] sm:$0xff]
    %v117 = vld [vmem:[%s0 + $0x360] sm:$0xff]
    %v118 = vld [vmem:[%s0 + $0x368] sm:$0xff]
    %v119 = vld [vmem:[%s0 + $0x370] sm:$0xff]
    %v120 = vld [vmem:[%s0 + $0x378] sm:$0xff]
    %v121 = vld [vmem:[%s0 + $0x380] sm:$0xff]
    %v122 = vld [vmem:[%s0 + $0x388] sm:$0xff]
    %v123 = vld [vmem:[%s0 + $0x390] sm:$0xff]
    %v124 = vld [vmem:[%s0 + $0x398] sm:$0xff]
    %v125 = vld [vmem:[%s0 + $0x3a0] sm:$0xff]
    %v126 = vld [vmem:[%s0 + $0x3a8] sm:$0xff]
    %v127 = vld [vmem:[%s0 + $0x3b0] sm:$0xff]
    %v128 = vld [vmem:[%s0 + $0x3b8] sm:$0xff]
    %v129 = vld [vmem:[%s0 + $0x3c0] sm:$0xff]
    %v130 = vld [vmem:[%s0 + $0x3c8] sm:$0xff]
    %v131 = vld [vmem:[%s0 + $0x3d0] sm:$0xff]
    %v132 = vld [vmem:[%s0 + $0x3d8] sm:$0xff]
    %v133 = vld [vmem:[%s0 + $0x3e0] sm:$0xff]
    %v134 = vld [vmem:[%s0 + $0x3e8] sm:$0xff]
    %v135 = vld [vmem:[%s0 + $0x3f0] sm:$0xff]
    %v136 = vld [vmem:[%s0 + $0x3f8] sm:$0xff]
    %v137 = vld [vmem:[%s0 + $0x400] sm:$0xff]
    %v138 = vld [vmem:[%s0 + $0x408] sm:$0xff]
    %v139 = vld [vmem:[%s0 + $0x410] sm:$0xff]
    %v140 = vld [vmem:[%s0 + $0x418] sm:$0xff]
    %v141 = vld [vmem:[%s0 + $0x420] sm:$0xff]
    %v142 = vld [vmem:[%s0 + $0x428] sm:$0xff]
    %v143 = vld [vmem:[%s0 + $0x430] sm:$0xff]
    %v144 = vld [vmem:[%s0 + $0x438] sm:$0xff]
    %v145 = vld [vmem:[%s0 + $0x440] sm:$0xff]
    %v146 = vld [vmem:[%s0 + $0x448] sm:$0xff]
    %v147 = vld [vmem:[%s0 + $0x450] sm:$0xff]
    %v148 = vld [vmem:[%s0 + $0x458] sm:$0xff]
    %v149 = vld [vmem:[%s0 + $0x460] sm:$0xff]
    %v150 = vld [vmem:[%s0 + $0x468] sm:$0xff]
    %v151 = vld [vmem:[%s0 + $0x470] sm:$0xff]
    %v152 = vld [vmem:[%s0 + $0x478] sm:$0xff]
    %v153 = vld [vmem:[%s0 + $0x480] sm:$0xff]
    %v154 = vld [vmem:[%s0 + $0x488] sm:$0xff]
    %v155 = vld [vmem:[%s0 + $0x490] sm:$0xff]
    %v156 = vld [vmem:[%s0 + $0x498] sm:$0xff]
    %v157 = vld [vmem:[%s0 + $0x4a0] sm:$0xff]
    %v158 = vld [vmem:[%s0 + $0x4a8] sm:$0xff]
    %v159 = vld [vmem:[%s0 + $0x4b0] sm:$0xff]
    %v160 = vld [vmem:[%s0 + $0x4b8] sm:$0xff]
    %v161 = vld [vmem:[%s0 + $0x4c0] sm:$0xff]
    %v162 = vld [vmem:[%s0 + $0x4c8] sm:$0xff]
    %v163 = vld [vmem:[%s0 + $0x4d0] sm:$0xff]
    %v164 = vld [vmem:[%s0 + $0x4d8] sm:$0xff]
    %v165 = vld [vmem:[%s0 + $0x4e0] sm:$0xff]
    %v166 = vld [vmem:[%s0 + $0x4e8] sm:$0xff]
    %v167 = vld [vmem:[%s0 + $0x4f0] sm:$0xff]
    %v168 = vld [vmem:[%s0 + $0x4f8] sm:$0xff]
    %v169 = vld [vmem:[%s0 + $0x500] sm:$0xff]
    %v170 = vld [vmem:[%s0 + $0x508] sm:$0xff]
    %v171 = vld [vmem:[%s0 + $0x510] sm:$0xff]
    %v172 = vld [vmem:[%s0 + $0x518] sm:$0xff]
    %v173 = vld [vmem:[%s0 + $0x520] sm:$0xff]
    %v174 = vld [vmem:[%s0 + $0x528] sm:$0xff]
    %v175 = vld [vmem:[%s0 + $0x530] sm:$0xff]
    %v176 = vld [vmem:[%s0 + $0x538] sm:$0xff]
    %v177 = vld [vmem:[%s0 + $0x540] sm:$0xff]
    %v178 = vld [vmem:[%s0 + $0x548] sm:$0xff]
    %v179 = vld [vmem:[%s0 + $0x550] sm:$0xff]
    %v180 = vld [vmem:[%s0 + $0x558] sm:$0xff]
    %v181 = vld [vmem:[%s0 + $0x560] sm:$0xff]
    %v182 = vld [vmem:[%s0 + $0x568] sm:$0xff]
    %v183 = vld [vmem:[%s0 + $0x570] sm:$0xff]
    %v184 = vld [vmem:[%s0 + $0x578] sm:$0xff]
    %v185 = vld [vmem:[%s0 + $0x580] sm:$0xff]
    %v186 = vld [vmem:[%s0 + $0x588] sm:$0xff]
    %v187 = vld [vmem:[%s0 + $0x590] sm:$0xff]
    %v188 = vld [vmem:[%s0 + $0x598] sm:$0xff]
    %v189 = vld [vmem:[%s0 + $0x5a0] sm:$0xff]
    %v190 = vld [vmem:[%s0 + $0x5a8] sm:$0xff]
    %v191 = vld [vmem:[%s0 + $0x5b0] sm:$0xff]
    %v192 = vld [vmem:[%s0 + $0x5b8] sm:$0xff]
    %v193 = vld [vmem:[%s0 + $0x5c0] sm:$0xff]
    %v194 = vld [vmem:[%s0 + $0x5c8] sm:$0xff]
    %v195 = vld [vmem:[%s0 + $0x5d0] sm:$0xff]
    %v196 = vld [vmem:[%s0 + $0x5d8] sm:$0xff]
    %v197 = vld [vmem:[%s0 + $0x5e0] sm:$0xff]
    %v198 = vld [vmem:[%s0 + $0x5e8] sm:$0xff]
    %v199 = vld [vmem:[%s0 + $0x5f0] sm:$0xff]
    %v200 = vld [vmem:[%s0 + $0x5f8] sm:$0xff]
    %v201 = vld [vmem:[%s0 + $0x600] sm:$0xff]
    %v202 = vld [vmem:[%s0 + $0x608] sm:$0xff]
    %v203 = vld [vmem:[%s0 + $0x610] sm:$0xff]
    %v204 = vld [vmem:[%s0 + $0x618] sm:$0xff]
    %v205 = vld [vmem:[%s0 + $0x620] sm:$0xff]
    %v206 = vld [vmem:[%s0 + $0x628] sm:$0xff]
    %v207 = vld [vmem:[%s0 + $0x630] sm:$0xff]
    %v208 = vld [vmem:[%s0 + $0x638] sm:$0xff]
    %v209 = vld [vmem:[%s0 + $0x640] sm:$0xff]
    %v210 = vld [vmem:[%s0 + $0x648] sm:$0xff]
    %v211 = vld [vmem:[%s0 + $0x650] sm:$0xff]
    %v212 = vld [vmem:[%s0 + $0x658] sm:$0xff]
    %v213 = vld [vmem:[%s0 + $0x660] sm:$0xff]
    %v214 = vld [vmem:[%s0 + $0x668] sm:$0xff]
    %v215 = vld [vmem:[%s0 + $0x670] sm:$0xff]
    %v216 = vld [vmem:[%s0 + $0x678] sm:$0xff]
    %v217 = vld [vmem:[%s0 + $0x680] sm:$0xff]
    %v218 = vld [vmem:[%s0 + $0x688] sm:$0xff]
    %v219 = vld [vmem:[%s0 + $0x690] sm:$0xff]
    %v220 = vld [vmem:[%s0 + $0x698] sm:$0xff]
    %v221 = vld [vmem:[%s0 + $0x6a0] sm:$0xff]
    %v222 = vld [vmem:[%s0 + $0x6a8] sm:$0xff]
    %v223 = vld [vmem:[%s0 + $0x6b0] sm:$0xff]
    %v224 = vld [vmem:[%s0 + $0x6b8] sm:$0xff]
    %v225 = vld [vmem:[%s0 + $0x6c0] sm:$0xff]
    %v226 = vld [vmem:[%s0 + $0x6c8] sm:$0xff]
    %v227 = vld [vmem:[%s0 + $0x6d0] sm:$0xff]
    %v228 = vld [vmem:[%s0 + $0x6d8] sm:$0xff]
    %v229 = vld [vmem:[%s0 + $0x6e0] sm:$0xff]
    %v230 = vld [vmem:[%s0 + $0x6e8] sm:$0xff]
    %v231 = vld [vmem:[%s0 + $0x6f0] sm:$0xff]
    %v232 = vld [vmem:[%s0 + $0x6f8] sm:$0xff]
    %v233 = vld [vmem:[%s0 + $0x700] sm:$0xff]
    %v234 = vld [vmem:[%s0 + $0x708] sm:$0xff]
    %v235 = vld [vmem:[%s0 + $0x710] sm:$0xff]
    %v236 = vld [vmem:[%s0 + $0x718] sm:$0xff]
    %v237 = vld [vmem:[%s0 + $0x720] sm:$0xff]
    %v238 = vld [vmem:[%s0 + $0x728] sm:$0xff]
    %v239 = vld [vmem:[%s0 + $0x730] sm:$0xff]
    %v240 = vld [vmem:[%s0 + $0x738] sm:$0xff]
    %v241 = vld [vmem:[%s0 + $0x740] sm:$0xff]
    %v242 = vld [vmem:[%s0 + $0x748] sm:$0xff]
    %v243 = vld [vmem:[%s0 + $0x750] sm:$0xff]
    %v244 = vld [vmem:[%s0 + $0x758] sm:$0xff]
    %v245 = vld [vmem:[%s0 + $0x760] sm:$0xff]
    %v246 = vld [vmem:[%s0 + $0x768] sm:$0xff]
    %v247 = vld [vmem:[%s0 + $0x770] sm:$0xff]
    %v248 = vld [vmem:[%s0 + $0x778] sm:$0xff]
    %v249 = vld [vmem:[%s0 + $0x780] sm:$0xff]
    %v250 = vld [vmem:[%s0 + $0x788] sm:$0xff]
    %v251 = vld [vmem:[%s0 + $0x790] sm:$0xff]
    %v252 = vld [vmem:[%s0 + $0x798] sm:$0xff]
    %v253 = vld [vmem:[%s0 + $0x7a0] sm:$0xff]
    %v254 = vld [vmem:[%s0 + $0x7a8] sm:$0xff]
    %v255 = vld [vmem:[%s0 + $0x7b0] sm:$0xff]
    %v256 = vld [vmem:[%s0 + $0x7b8] sm:$0xff]
    %v257 = vld [vmem:[%s0 + $0x7c0] sm:$0xff]
    %v258 = vld [vmem:[%s0 + $0x7c8] sm:$0xff]
    %v259 = vld [vmem:[%s0 + $0x7d0] sm:$0xff]
    %v260 = vld [vmem:[%s0 + $0x7d8] sm:$0xff]
    %v261 = vld [vmem:[%s0 + $0x7e0] sm:$0xff]
    %v262 = vld [vmem:[%s0 + $0x7e8] sm:$0xff]
    %v263 = vld [vmem:[%s0 + $0x7f0] sm:$0xff]
    %v264 = vld [vmem:[%s0 + $0x7f8] sm:$0xff]
    %vm265 = vcmask 15360
    %v266 = vsel %vm265, %v9, -inf
    %267 = vmax.xlane.f32.xlu0 %v266
    %v268 = vpop.xlane.xlu0 %267
    %v269 = vsel %vm265, %v10, -inf
    %270 = vmax.xlane.f32.xlu0 %v269
    %v271 = vpop.xlane.xlu0 %270
    %v272 = vsel %vm265, %v11, -inf
    %273 = vmax.xlane.f32.xlu0 %v272
    %v274 = vpop.xlane.xlu0 %273
    %v275 = vsel %vm265, %v12, -inf
    %276 = vmax.xlane.f32.xlu0 %v275
    %v277 = vpop.xlane.xlu0 %276
    %v278 = vsel %vm265, %v13, -inf
    %279 = vmax.xlane.f32.xlu0 %v278
    %v280 = vpop.xlane.xlu0 %279
    %v281 = vsel %vm265, %v14, -inf
    %282 = vmax.xlane.f32.xlu0 %v281
    %v283 = vpop.xlane.xlu0 %282
    %v284 = vsel %vm265, %v15, -inf
    %285 = vmax.xlane.f32.xlu0 %v284
    %v286 = vpop.xlane.xlu0 %285
    %v287 = vsel %vm265, %v16, -inf
    %288 = vmax.xlane.f32.xlu0 %v287
    %v289 = vpop.xlane.xlu0 %288
    %v290 = vsel %vm265, %v17, -inf
    %291 = vmax.xlane.f32.xlu0 %v290
    %v292 = vpop.xlane.xlu0 %291
    %v293 = vsel %vm265, %v18, -inf
    %294 = vmax.xlane.f32.xlu0 %v293
    %v295 = vpop.xlane.xlu0 %294
    %v296 = vsel %vm265, %v19, -inf
    %297 = vmax.xlane.f32.xlu0 %v296
    %v298 = vpop.xlane.xlu0 %297
    %v299 = vsel %vm265, %v20, -inf
    %300 = vmax.xlane.f32.xlu0 %v299
    %v301 = vpop.xlane.xlu0 %300
    %v302 = vsel %vm265, %v21, -inf
    %303 = vmax.xlane.f32.xlu0 %v302
    %v304 = vpop.xlane.xlu0 %303
    %v305 = vsel %vm265, %v22, -inf
    %306 = vmax.xlane.f32.xlu0 %v305
    %v307 = vpop.xlane.xlu0 %306
    %v308 = vsel %vm265, %v23, -inf
    %309 = vmax.xlane.f32.xlu0 %v308
    %v310 = vpop.xlane.xlu0 %309
    %v311 = vsel %vm265, %v24, -inf
    %312 = vmax.xlane.f32.xlu0 %v311
    %v313 = vpop.xlane.xlu0 %312
    %v314 = vsel %vm265, %v25, -inf
    %315 = vmax.xlane.f32.xlu0 %v314
    %v316 = vpop.xlane.xlu0 %315
    %v317 = vsel %vm265, %v26, -inf
    %318 = vmax.xlane.f32.xlu0 %v317
    %v319 = vpop.xlane.xlu0 %318
    %v320 = vsel %vm265, %v27, -inf
    %321 = vmax.xlane.f32.xlu0 %v320
    %v322 = vpop.xlane.xlu0 %321
    %v323 = vsel %vm265, %v28, -inf
    %324 = vmax.xlane.f32.xlu0 %v323
    %v325 = vpop.xlane.xlu0 %324
    %v326 = vsel %vm265, %v29, -inf
    %327 = vmax.xlane.f32.xlu0 %v326
    %v328 = vpop.xlane.xlu0 %327
    %v329 = vsel %vm265, %v30, -inf
    %330 = vmax.xlane.f32.xlu0 %v329
    %v331 = vpop.xlane.xlu0 %330
    %v332 = vsel %vm265, %v31, -inf
    %333 = vmax.xlane.f32.xlu0 %v332
    %v334 = vpop.xlane.xlu0 %333
    %v335 = vsel %vm265, %v32, -inf
    %336 = vmax.xlane.f32.xlu0 %v335
    %v337 = vpop.xlane.xlu0 %336
    %v338 = vsel %vm265, %v33, -inf
    %339 = vmax.xlane.f32.xlu0 %v338
    %v340 = vpop.xlane.xlu0 %339
    %v341 = vsel %vm265, %v34, -inf
    %342 = vmax.xlane.f32.xlu0 %v341
    %v343 = vpop.xlane.xlu0 %342
    %v344 = vsel %vm265, %v35, -inf
    %345 = vmax.xlane.f32.xlu0 %v344
    %v346 = vpop.xlane.xlu0 %345
    %v347 = vsel %vm265, %v36, -inf
    %348 = vmax.xlane.f32.xlu0 %v347
    %v349 = vpop.xlane.xlu0 %348
    %v350 = vsel %vm265, %v37, -inf
    %351 = vmax.xlane.f32.xlu0 %v350
    %v352 = vpop.xlane.xlu0 %351
    %v353 = vsel %vm265, %v38, -inf
    %354 = vmax.xlane.f32.xlu0 %v353
    %v355 = vpop.xlane.xlu0 %354
    %v356 = vsel %vm265, %v39, -inf
    %357 = vmax.xlane.f32.xlu0 %v356
    %v358 = vpop.xlane.xlu0 %357
    %v359 = vsel %vm265, %v40, -inf
    %360 = vmax.xlane.f32.xlu0 %v359
    %v361 = vpop.xlane.xlu0 %360
    %v362 = vsel %vm265, %v41, -inf
    %363 = vmax.xlane.f32.xlu0 %v362
    %v364 = vpop.xlane.xlu0 %363
    %v365 = vsel %vm265, %v42, -inf
    %366 = vmax.xlane.f32.xlu0 %v365
    %v367 = vpop.xlane.xlu0 %366
    %v368 = vsel %vm265, %v43, -inf
    %369 = vmax.xlane.f32.xlu0 %v368
    %v370 = vpop.xlane.xlu0 %369
    %v371 = vsel %vm265, %v44, -inf
    %372 = vmax.xlane.f32.xlu0 %v371
    %v373 = vpop.xlane.xlu0 %372
    %v374 = vsel %vm265, %v45, -inf
    %375 = vmax.xlane.f32.xlu0 %v374
    %v376 = vpop.xlane.xlu0 %375
    %v377 = vsel %vm265, %v46, -inf
    %378 = vmax.xlane.f32.xlu0 %v377
    %v379 = vpop.xlane.xlu0 %378
    %v380 = vsel %vm265, %v47, -inf
    %381 = vmax.xlane.f32.xlu0 %v380
    %v382 = vpop.xlane.xlu0 %381
    %v383 = vsel %vm265, %v48, -inf
    %384 = vmax.xlane.f32.xlu0 %v383
    %v385 = vpop.xlane.xlu0 %384
    %v386 = vsel %vm265, %v49, -inf
    %387 = vmax.xlane.f32.xlu0 %v386
    %v388 = vpop.xlane.xlu0 %387
    %v389 = vsel %vm265, %v50, -inf
    %390 = vmax.xlane.f32.xlu0 %v389
    %v391 = vpop.xlane.xlu0 %390
    %v392 = vsel %vm265, %v51, -inf
    %393 = vmax.xlane.f32.xlu0 %v392
    %v394 = vpop.xlane.xlu0 %393
    %v395 = vsel %vm265, %v52, -inf
    %396 = vmax.xlane.f32.xlu0 %v395
    %v397 = vpop.xlane.xlu0 %396
    %v398 = vsel %vm265, %v53, -inf
    %399 = vmax.xlane.f32.xlu0 %v398
    %v400 = vpop.xlane.xlu0 %399
    %v401 = vsel %vm265, %v54, -inf
    %402 = vmax.xlane.f32.xlu0 %v401
    %v403 = vpop.xlane.xlu0 %402
    %v404 = vsel %vm265, %v55, -inf
    %405 = vmax.xlane.f32.xlu0 %v404
    %v406 = vpop.xlane.xlu0 %405
    %v407 = vsel %vm265, %v56, -inf
    %408 = vmax.xlane.f32.xlu0 %v407
    %v409 = vpop.xlane.xlu0 %408
    %v410 = vsel %vm265, %v57, -inf
    %411 = vmax.xlane.f32.xlu0 %v410
    %v412 = vpop.xlane.xlu0 %411
    %v413 = vsel %vm265, %v58, -inf
    %414 = vmax.xlane.f32.xlu0 %v413
    %v415 = vpop.xlane.xlu0 %414
    %v416 = vsel %vm265, %v59, -inf
    %417 = vmax.xlane.f32.xlu0 %v416
    %v418 = vpop.xlane.xlu0 %417
    %v419 = vsel %vm265, %v60, -inf
    %420 = vmax.xlane.f32.xlu0 %v419
    %v421 = vpop.xlane.xlu0 %420
    %v422 = vsel %vm265, %v61, -inf
    %423 = vmax.xlane.f32.xlu0 %v422
    %v424 = vpop.xlane.xlu0 %423
    %v425 = vsel %vm265, %v62, -inf
    %426 = vmax.xlane.f32.xlu0 %v425
    %v427 = vpop.xlane.xlu0 %426
    %v428 = vsel %vm265, %v63, -inf
    %429 = vmax.xlane.f32.xlu0 %v428
    %v430 = vpop.xlane.xlu0 %429
    %v431 = vsel %vm265, %v64, -inf
    %432 = vmax.xlane.f32.xlu0 %v431
    %v433 = vpop.xlane.xlu0 %432
    %v434 = vsel %vm265, %v65, -inf
    %435 = vmax.xlane.f32.xlu0 %v434
    %v436 = vpop.xlane.xlu0 %435
    %v437 = vsel %vm265, %v66, -inf
    %438 = vmax.xlane.f32.xlu0 %v437
    %v439 = vpop.xlane.xlu0 %438
    %v440 = vsel %vm265, %v67, -inf
    %441 = vmax.xlane.f32.xlu0 %v440
    %v442 = vpop.xlane.xlu0 %441
    %v443 = vsel %vm265, %v68, -inf
    %444 = vmax.xlane.f32.xlu0 %v443
    %v445 = vpop.xlane.xlu0 %444
    %v446 = vsel %vm265, %v69, -inf
    %447 = vmax.xlane.f32.xlu0 %v446
    %v448 = vpop.xlane.xlu0 %447
    %v449 = vsel %vm265, %v70, -inf
    %450 = vmax.xlane.f32.xlu0 %v449
    %v451 = vpop.xlane.xlu0 %450
    %v452 = vsel %vm265, %v71, -inf
    %453 = vmax.xlane.f32.xlu0 %v452
    %v454 = vpop.xlane.xlu0 %453
    %v455 = vsel %vm265, %v72, -inf
    %456 = vmax.xlane.f32.xlu0 %v455
    %v457 = vpop.xlane.xlu0 %456
    %v458 = vsel %vm265, %v73, -inf
    %459 = vmax.xlane.f32.xlu0 %v458
    %v460 = vpop.xlane.xlu0 %459
    %v461 = vsel %vm265, %v74, -inf
    %462 = vmax.xlane.f32.xlu0 %v461
    %v463 = vpop.xlane.xlu0 %462
    %v464 = vsel %vm265, %v75, -inf
    %465 = vmax.xlane.f32.xlu0 %v464
    %v466 = vpop.xlane.xlu0 %465
    %v467 = vsel %vm265, %v76, -inf
    %468 = vmax.xlane.f32.xlu0 %v467
    %v469 = vpop.xlane.xlu0 %468
    %v470 = vsel %vm265, %v77, -inf
    %471 = vmax.xlane.f32.xlu0 %v470
    %v472 = vpop.xlane.xlu0 %471
    %v473 = vsel %vm265, %v78, -inf
    %474 = vmax.xlane.f32.xlu0 %v473
    %v475 = vpop.xlane.xlu0 %474
    %v476 = vsel %vm265, %v79, -inf
    %477 = vmax.xlane.f32.xlu0 %v476
    %v478 = vpop.xlane.xlu0 %477
    %v479 = vsel %vm265, %v80, -inf
    %480 = vmax.xlane.f32.xlu0 %v479
    %v481 = vpop.xlane.xlu0 %480
    %v482 = vsel %vm265, %v81, -inf
    %483 = vmax.xlane.f32.xlu0 %v482
    %v484 = vpop.xlane.xlu0 %483
    %v485 = vsel %vm265, %v82, -inf
    %486 = vmax.xlane.f32.xlu0 %v485
    %v487 = vpop.xlane.xlu0 %486
    %v488 = vsel %vm265, %v83, -inf
    %489 = vmax.xlane.f32.xlu0 %v488
    %v490 = vpop.xlane.xlu0 %489
    %v491 = vsel %vm265, %v84, -inf
    %492 = vmax.xlane.f32.xlu0 %v491
    %v493 = vpop.xlane.xlu0 %492
    %v494 = vsel %vm265, %v85, -inf
    %495 = vmax.xlane.f32.xlu0 %v494
    %v496 = vpop.xlane.xlu0 %495
    %v497 = vsel %vm265, %v86, -inf
    %498 = vmax.xlane.f32.xlu0 %v497
    %v499 = vpop.xlane.xlu0 %498
    %v500 = vsel %vm265, %v87, -inf
    %501 = vmax.xlane.f32.xlu0 %v500
    %v502 = vpop.xlane.xlu0 %501
    %v503 = vsel %vm265, %v88, -inf
    %504 = vmax.xlane.f32.xlu0 %v503
    %v505 = vpop.xlane.xlu0 %504
    %v506 = vsel %vm265, %v89, -inf
    %507 = vmax.xlane.f32.xlu0 %v506
    %v508 = vpop.xlane.xlu0 %507
    %v509 = vsel %vm265, %v90, -inf
    %510 = vmax.xlane.f32.xlu0 %v509
    %v511 = vpop.xlane.xlu0 %510
    %v512 = vsel %vm265, %v91, -inf
    %513 = vmax.xlane.f32.xlu0 %v512
    %v514 = vpop.xlane.xlu0 %513
    %v515 = vsel %vm265, %v92, -inf
    %516 = vmax.xlane.f32.xlu0 %v515
    %v517 = vpop.xlane.xlu0 %516
    %v518 = vsel %vm265, %v93, -inf
    %519 = vmax.xlane.f32.xlu0 %v518
    %v520 = vpop.xlane.xlu0 %519
    %v521 = vsel %vm265, %v94, -inf
    %522 = vmax.xlane.f32.xlu0 %v521
    %v523 = vpop.xlane.xlu0 %522
    %v524 = vsel %vm265, %v95, -inf
    %525 = vmax.xlane.f32.xlu0 %v524
    %v526 = vpop.xlane.xlu0 %525
    %v527 = vsel %vm265, %v96, -inf
    %528 = vmax.xlane.f32.xlu0 %v527
    %v529 = vpop.xlane.xlu0 %528
    %v530 = vsel %vm265, %v97, -inf
    %531 = vmax.xlane.f32.xlu0 %v530
    %v532 = vpop.xlane.xlu0 %531
    %v533 = vsel %vm265, %v98, -inf
    %534 = vmax.xlane.f32.xlu0 %v533
    %v535 = vpop.xlane.xlu0 %534
    %v536 = vsel %vm265, %v99, -inf
    %537 = vmax.xlane.f32.xlu0 %v536
    %v538 = vpop.xlane.xlu0 %537
    %v539 = vsel %vm265, %v100, -inf
    %540 = vmax.xlane.f32.xlu0 %v539
    %v541 = vpop.xlane.xlu0 %540
    %v542 = vsel %vm265, %v101, -inf
    %543 = vmax.xlane.f32.xlu0 %v542
    %v544 = vpop.xlane.xlu0 %543
    %v545 = vsel %vm265, %v102, -inf
    %546 = vmax.xlane.f32.xlu0 %v545
    %v547 = vpop.xlane.xlu0 %546
    %v548 = vsel %vm265, %v103, -inf
    %549 = vmax.xlane.f32.xlu0 %v548
    %v550 = vpop.xlane.xlu0 %549
    %v551 = vsel %vm265, %v104, -inf
    %552 = vmax.xlane.f32.xlu0 %v551
    %v553 = vpop.xlane.xlu0 %552
    %v554 = vsel %vm265, %v105, -inf
    %555 = vmax.xlane.f32.xlu0 %v554
    %v556 = vpop.xlane.xlu0 %555
    %v557 = vsel %vm265, %v106, -inf
    %558 = vmax.xlane.f32.xlu0 %v557
    %v559 = vpop.xlane.xlu0 %558
    %v560 = vsel %vm265, %v107, -inf
    %561 = vmax.xlane.f32.xlu0 %v560
    %v562 = vpop.xlane.xlu0 %561
    %v563 = vsel %vm265, %v108, -inf
    %564 = vmax.xlane.f32.xlu0 %v563
    %v565 = vpop.xlane.xlu0 %564
    %v566 = vsel %vm265, %v109, -inf
    %567 = vmax.xlane.f32.xlu0 %v566
    %v568 = vpop.xlane.xlu0 %567
    %v569 = vsel %vm265, %v110, -inf
    %570 = vmax.xlane.f32.xlu0 %v569
    %v571 = vpop.xlane.xlu0 %570
    %v572 = vsel %vm265, %v111, -inf
    %573 = vmax.xlane.f32.xlu0 %v572
    %v574 = vpop.xlane.xlu0 %573
    %v575 = vsel %vm265, %v112, -inf
    %576 = vmax.xlane.f32.xlu0 %v575
    %v577 = vpop.xlane.xlu0 %576
    %v578 = vsel %vm265, %v113, -inf
    %579 = vmax.xlane.f32.xlu0 %v578
    %v580 = vpop.xlane.xlu0 %579
    %v581 = vsel %vm265, %v114, -inf
    %582 = vmax.xlane.f32.xlu0 %v581
    %v583 = vpop.xlane.xlu0 %582
    %v584 = vsel %vm265, %v115, -inf
    %585 = vmax.xlane.f32.xlu0 %v584
    %v586 = vpop.xlane.xlu0 %585
    %v587 = vsel %vm265, %v116, -inf
    %588 = vmax.xlane.f32.xlu0 %v587
    %v589 = vpop.xlane.xlu0 %588
    %v590 = vsel %vm265, %v117, -inf
    %591 = vmax.xlane.f32.xlu0 %v590
    %v592 = vpop.xlane.xlu0 %591
    %v593 = vsel %vm265, %v118, -inf
    %594 = vmax.xlane.f32.xlu0 %v593
    %v595 = vpop.xlane.xlu0 %594
    %v596 = vsel %vm265, %v119, -inf
    %597 = vmax.xlane.f32.xlu0 %v596
    %v598 = vpop.xlane.xlu0 %597
    %v599 = vsel %vm265, %v120, -inf
    %600 = vmax.xlane.f32.xlu0 %v599
    %v601 = vpop.xlane.xlu0 %600
    %v602 = vsel %vm265, %v121, -inf
    %603 = vmax.xlane.f32.xlu0 %v602
    %v604 = vpop.xlane.xlu0 %603
    %v605 = vsel %vm265, %v122, -inf
    %606 = vmax.xlane.f32.xlu0 %v605
    %v607 = vpop.xlane.xlu0 %606
    %v608 = vsel %vm265, %v123, -inf
    %609 = vmax.xlane.f32.xlu0 %v608
    %v610 = vpop.xlane.xlu0 %609
    %v611 = vsel %vm265, %v124, -inf
    %612 = vmax.xlane.f32.xlu0 %v611
    %v613 = vpop.xlane.xlu0 %612
    %v614 = vsel %vm265, %v125, -inf
    %615 = vmax.xlane.f32.xlu0 %v614
    %v616 = vpop.xlane.xlu0 %615
    %v617 = vsel %vm265, %v126, -inf
    %618 = vmax.xlane.f32.xlu0 %v617
    %v619 = vpop.xlane.xlu0 %618
    %v620 = vsel %vm265, %v127, -inf
    %621 = vmax.xlane.f32.xlu0 %v620
    %v622 = vpop.xlane.xlu0 %621
    %v623 = vsel %vm265, %v128, -inf
    %624 = vmax.xlane.f32.xlu0 %v623
    %v625 = vpop.xlane.xlu0 %624
    %v626 = vsel %vm265, %v129, -inf
    %627 = vmax.xlane.f32.xlu0 %v626
    %v628 = vpop.xlane.xlu0 %627
    %v629 = vsel %vm265, %v130, -inf
    %630 = vmax.xlane.f32.xlu0 %v629
    %v631 = vpop.xlane.xlu0 %630
    %v632 = vsel %vm265, %v131, -inf
    %633 = vmax.xlane.f32.xlu0 %v632
    %v634 = vpop.xlane.xlu0 %633
    %v635 = vsel %vm265, %v132, -inf
    %636 = vmax.xlane.f32.xlu0 %v635
    %v637 = vpop.xlane.xlu0 %636
    %v638 = vsel %vm265, %v133, -inf
    %639 = vmax.xlane.f32.xlu0 %v638
    %v640 = vpop.xlane.xlu0 %639
    %v641 = vsel %vm265, %v134, -inf
    %642 = vmax.xlane.f32.xlu0 %v641
    %v643 = vpop.xlane.xlu0 %642
    %v644 = vsel %vm265, %v135, -inf
    %645 = vmax.xlane.f32.xlu0 %v644
    %v646 = vpop.xlane.xlu0 %645
    %v647 = vsel %vm265, %v136, -inf
    %648 = vmax.xlane.f32.xlu0 %v647
    %v649 = vpop.xlane.xlu0 %648
    %v650 = vsel %vm265, %v137, -inf
    %651 = vmax.xlane.f32.xlu0 %v650
    %v652 = vpop.xlane.xlu0 %651
    %v653 = vsel %vm265, %v138, -inf
    %654 = vmax.xlane.f32.xlu0 %v653
    %v655 = vpop.xlane.xlu0 %654
    %v656 = vsel %vm265, %v139, -inf
    %657 = vmax.xlane.f32.xlu0 %v656
    %v658 = vpop.xlane.xlu0 %657
    %v659 = vsel %vm265, %v140, -inf
    %660 = vmax.xlane.f32.xlu0 %v659
    %v661 = vpop.xlane.xlu0 %660
    %v662 = vsel %vm265, %v141, -inf
    %663 = vmax.xlane.f32.xlu0 %v662
    %v664 = vpop.xlane.xlu0 %663
    %v665 = vsel %vm265, %v142, -inf
    %666 = vmax.xlane.f32.xlu0 %v665
    %v667 = vpop.xlane.xlu0 %666
    %v668 = vsel %vm265, %v143, -inf
    %669 = vmax.xlane.f32.xlu0 %v668
    %v670 = vpop.xlane.xlu0 %669
    %v671 = vsel %vm265, %v144, -inf
    %672 = vmax.xlane.f32.xlu0 %v671
    %v673 = vpop.xlane.xlu0 %672
    %v674 = vsel %vm265, %v145, -inf
    %675 = vmax.xlane.f32.xlu0 %v674
    %v676 = vpop.xlane.xlu0 %675
    %v677 = vsel %vm265, %v146, -inf
    %678 = vmax.xlane.f32.xlu0 %v677
    %v679 = vpop.xlane.xlu0 %678
    %v680 = vsel %vm265, %v147, -inf
    %681 = vmax.xlane.f32.xlu0 %v680
    %v682 = vpop.xlane.xlu0 %681
    %v683 = vsel %vm265, %v148, -inf
    %684 = vmax.xlane.f32.xlu0 %v683
    %v685 = vpop.xlane.xlu0 %684
    %v686 = vsel %vm265, %v149, -inf
    %687 = vmax.xlane.f32.xlu0 %v686
    %v688 = vpop.xlane.xlu0 %687
    %v689 = vsel %vm265, %v150, -inf
    %690 = vmax.xlane.f32.xlu0 %v689
    %v691 = vpop.xlane.xlu0 %690
    %v692 = vsel %vm265, %v151, -inf
    %693 = vmax.xlane.f32.xlu0 %v692
    %v694 = vpop.xlane.xlu0 %693
    %v695 = vsel %vm265, %v152, -inf
    %696 = vmax.xlane.f32.xlu0 %v695
    %v697 = vpop.xlane.xlu0 %696
    %v698 = vsel %vm265, %v153, -inf
    %699 = vmax.xlane.f32.xlu0 %v698
    %v700 = vpop.xlane.xlu0 %699
    %v701 = vsel %vm265, %v154, -inf
    %702 = vmax.xlane.f32.xlu0 %v701
    %v703 = vpop.xlane.xlu0 %702
    %v704 = vsel %vm265, %v155, -inf
    %705 = vmax.xlane.f32.xlu0 %v704
    %v706 = vpop.xlane.xlu0 %705
    %v707 = vsel %vm265, %v156, -inf
    %708 = vmax.xlane.f32.xlu0 %v707
    %v709 = vpop.xlane.xlu0 %708
    %v710 = vsel %vm265, %v157, -inf
    %711 = vmax.xlane.f32.xlu0 %v710
    %v712 = vpop.xlane.xlu0 %711
    %v713 = vsel %vm265, %v158, -inf
    %714 = vmax.xlane.f32.xlu0 %v713
    %v715 = vpop.xlane.xlu0 %714
    %v716 = vsel %vm265, %v159, -inf
    %717 = vmax.xlane.f32.xlu0 %v716
    %v718 = vpop.xlane.xlu0 %717
    %v719 = vsel %vm265, %v160, -inf
    %720 = vmax.xlane.f32.xlu0 %v719
    %v721 = vpop.xlane.xlu0 %720
    %v722 = vsel %vm265, %v161, -inf
    %723 = vmax.xlane.f32.xlu0 %v722
    %v724 = vpop.xlane.xlu0 %723
    %v725 = vsel %vm265, %v162, -inf
    %726 = vmax.xlane.f32.xlu0 %v725
    %v727 = vpop.xlane.xlu0 %726
    %v728 = vsel %vm265, %v163, -inf
    %729 = vmax.xlane.f32.xlu0 %v728
    %v730 = vpop.xlane.xlu0 %729
    %v731 = vsel %vm265, %v164, -inf
    %732 = vmax.xlane.f32.xlu0 %v731
    %v733 = vpop.xlane.xlu0 %732
    %v734 = vsel %vm265, %v165, -inf
    %735 = vmax.xlane.f32.xlu0 %v734
    %v736 = vpop.xlane.xlu0 %735
    %v737 = vsel %vm265, %v166, -inf
    %738 = vmax.xlane.f32.xlu0 %v737
    %v739 = vpop.xlane.xlu0 %738
    %v740 = vsel %vm265, %v167, -inf
    %741 = vmax.xlane.f32.xlu0 %v740
    %v742 = vpop.xlane.xlu0 %741
    %v743 = vsel %vm265, %v168, -inf
    %744 = vmax.xlane.f32.xlu0 %v743
    %v745 = vpop.xlane.xlu0 %744
    %v746 = vsel %vm265, %v169, -inf
    %747 = vmax.xlane.f32.xlu0 %v746
    %v748 = vpop.xlane.xlu0 %747
    %v749 = vsel %vm265, %v170, -inf
    %750 = vmax.xlane.f32.xlu0 %v749
    %v751 = vpop.xlane.xlu0 %750
    %v752 = vsel %vm265, %v171, -inf
    %753 = vmax.xlane.f32.xlu0 %v752
    %v754 = vpop.xlane.xlu0 %753
    %v755 = vsel %vm265, %v172, -inf
    %756 = vmax.xlane.f32.xlu0 %v755
    %v757 = vpop.xlane.xlu0 %756
    %v758 = vsel %vm265, %v173, -inf
    %759 = vmax.xlane.f32.xlu0 %v758
    %v760 = vpop.xlane.xlu0 %759
    %v761 = vsel %vm265, %v174, -inf
    %762 = vmax.xlane.f32.xlu0 %v761
    %v763 = vpop.xlane.xlu0 %762
    %v764 = vsel %vm265, %v175, -inf
    %765 = vmax.xlane.f32.xlu0 %v764
    %v766 = vpop.xlane.xlu0 %765
    %v767 = vsel %vm265, %v176, -inf
    %768 = vmax.xlane.f32.xlu0 %v767
    %v769 = vpop.xlane.xlu0 %768
    %v770 = vsel %vm265, %v177, -inf
    %771 = vmax.xlane.f32.xlu0 %v770
    %v772 = vpop.xlane.xlu0 %771
    %v773 = vsel %vm265, %v178, -inf
    %774 = vmax.xlane.f32.xlu0 %v773
    %v775 = vpop.xlane.xlu0 %774
    %v776 = vsel %vm265, %v179, -inf
    %777 = vmax.xlane.f32.xlu0 %v776
    %v778 = vpop.xlane.xlu0 %777
    %v779 = vsel %vm265, %v180, -inf
    %780 = vmax.xlane.f32.xlu0 %v779
    %v781 = vpop.xlane.xlu0 %780
    %v782 = vsel %vm265, %v181, -inf
    %783 = vmax.xlane.f32.xlu0 %v782
    %v784 = vpop.xlane.xlu0 %783
    %v785 = vsel %vm265, %v182, -inf
    %786 = vmax.xlane.f32.xlu0 %v785
    %v787 = vpop.xlane.xlu0 %786
    %v788 = vsel %vm265, %v183, -inf
    %789 = vmax.xlane.f32.xlu0 %v788
    %v790 = vpop.xlane.xlu0 %789
    %v791 = vsel %vm265, %v184, -inf
    %792 = vmax.xlane.f32.xlu0 %v791
    %v793 = vpop.xlane.xlu0 %792
    %v794 = vsel %vm265, %v185, -inf
    %795 = vmax.xlane.f32.xlu0 %v794
    %v796 = vpop.xlane.xlu0 %795
    %v797 = vsel %vm265, %v186, -inf
    %798 = vmax.xlane.f32.xlu0 %v797
    %v799 = vpop.xlane.xlu0 %798
    %v800 = vsel %vm265, %v187, -inf
    %801 = vmax.xlane.f32.xlu0 %v800
    %v802 = vpop.xlane.xlu0 %801
    %v803 = vsel %vm265, %v188, -inf
    %804 = vmax.xlane.f32.xlu0 %v803
    %v805 = vpop.xlane.xlu0 %804
    %v806 = vsel %vm265, %v189, -inf
    %807 = vmax.xlane.f32.xlu0 %v806
    %v808 = vpop.xlane.xlu0 %807
    %v809 = vsel %vm265, %v190, -inf
    %810 = vmax.xlane.f32.xlu0 %v809
    %v811 = vpop.xlane.xlu0 %810
    %v812 = vsel %vm265, %v191, -inf
    %813 = vmax.xlane.f32.xlu0 %v812
    %v814 = vpop.xlane.xlu0 %813
    %v815 = vsel %vm265, %v192, -inf
    %816 = vmax.xlane.f32.xlu0 %v815
    %v817 = vpop.xlane.xlu0 %816
    %v818 = vsel %vm265, %v193, -inf
    %819 = vmax.xlane.f32.xlu0 %v818
    %v820 = vpop.xlane.xlu0 %819
    %v821 = vsel %vm265, %v194, -inf
    %822 = vmax.xlane.f32.xlu0 %v821
    %v823 = vpop.xlane.xlu0 %822
    %v824 = vsel %vm265, %v195, -inf
    %825 = vmax.xlane.f32.xlu0 %v824
    %v826 = vpop.xlane.xlu0 %825
    %v827 = vsel %vm265, %v196, -inf
    %828 = vmax.xlane.f32.xlu0 %v827
    %v829 = vpop.xlane.xlu0 %828
    %v830 = vsel %vm265, %v197, -inf
    %831 = vmax.xlane.f32.xlu0 %v830
    %v832 = vpop.xlane.xlu0 %831
    %v833 = vsel %vm265, %v198, -inf
    %834 = vmax.xlane.f32.xlu0 %v833
    %v835 = vpop.xlane.xlu0 %834
    %v836 = vsel %vm265, %v199, -inf
    %837 = vmax.xlane.f32.xlu0 %v836
    %v838 = vpop.xlane.xlu0 %837
    %v839 = vsel %vm265, %v200, -inf
    %840 = vmax.xlane.f32.xlu0 %v839
    %v841 = vpop.xlane.xlu0 %840
    %v842 = vsel %vm265, %v201, -inf
    %843 = vmax.xlane.f32.xlu0 %v842
    %v844 = vpop.xlane.xlu0 %843
    %v845 = vsel %vm265, %v202, -inf
    %846 = vmax.xlane.f32.xlu0 %v845
    %v847 = vpop.xlane.xlu0 %846
    %v848 = vsel %vm265, %v203, -inf
    %849 = vmax.xlane.f32.xlu0 %v848
    %v850 = vpop.xlane.xlu0 %849
    %v851 = vsel %vm265, %v204, -inf
    %852 = vmax.xlane.f32.xlu0 %v851
    %v853 = vpop.xlane.xlu0 %852
    %v854 = vsel %vm265, %v205, -inf
    %855 = vmax.xlane.f32.xlu0 %v854
    %v856 = vpop.xlane.xlu0 %855
    %v857 = vsel %vm265, %v206, -inf
    %858 = vmax.xlane.f32.xlu0 %v857
    %v859 = vpop.xlane.xlu0 %858
    %v860 = vsel %vm265, %v207, -inf
    %861 = vmax.xlane.f32.xlu0 %v860
    %v862 = vpop.xlane.xlu0 %861
    %v863 = vsel %vm265, %v208, -inf
    %864 = vmax.xlane.f32.xlu0 %v863
    %v865 = vpop.xlane.xlu0 %864
    %v866 = vsel %vm265, %v209, -inf
    %867 = vmax.xlane.f32.xlu0 %v866
    %v868 = vpop.xlane.xlu0 %867
    %v869 = vsel %vm265, %v210, -inf
    %870 = vmax.xlane.f32.xlu0 %v869
    %v871 = vpop.xlane.xlu0 %870
    %v872 = vsel %vm265, %v211, -inf
    %873 = vmax.xlane.f32.xlu0 %v872
    %v874 = vpop.xlane.xlu0 %873
    %v875 = vsel %vm265, %v212, -inf
    %876 = vmax.xlane.f32.xlu0 %v875
    %v877 = vpop.xlane.xlu0 %876
    %v878 = vsel %vm265, %v213, -inf
    %879 = vmax.xlane.f32.xlu0 %v878
    %v880 = vpop.xlane.xlu0 %879
    %v881 = vsel %vm265, %v214, -inf
    %882 = vmax.xlane.f32.xlu0 %v881
    %v883 = vpop.xlane.xlu0 %882
    %v884 = vsel %vm265, %v215, -inf
    %885 = vmax.xlane.f32.xlu0 %v884
    %v886 = vpop.xlane.xlu0 %885
    %v887 = vsel %vm265, %v216, -inf
    %888 = vmax.xlane.f32.xlu0 %v887
    %v889 = vpop.xlane.xlu0 %888
    %v890 = vsel %vm265, %v217, -inf
    %891 = vmax.xlane.f32.xlu0 %v890
    %v892 = vpop.xlane.xlu0 %891
    %v893 = vsel %vm265, %v218, -inf
    %894 = vmax.xlane.f32.xlu0 %v893
    %v895 = vpop.xlane.xlu0 %894
    %v896 = vsel %vm265, %v219, -inf
    %897 = vmax.xlane.f32.xlu0 %v896
    %v898 = vpop.xlane.xlu0 %897
    %v899 = vsel %vm265, %v220, -inf
    %900 = vmax.xlane.f32.xlu0 %v899
    %v901 = vpop.xlane.xlu0 %900
    %v902 = vsel %vm265, %v221, -inf
    %903 = vmax.xlane.f32.xlu0 %v902
    %v904 = vpop.xlane.xlu0 %903
    %v905 = vsel %vm265, %v222, -inf
    %906 = vmax.xlane.f32.xlu0 %v905
    %v907 = vpop.xlane.xlu0 %906
    %v908 = vsel %vm265, %v223, -inf
    %909 = vmax.xlane.f32.xlu0 %v908
    %v910 = vpop.xlane.xlu0 %909
    %v911 = vsel %vm265, %v224, -inf
    %912 = vmax.xlane.f32.xlu0 %v911
    %v913 = vpop.xlane.xlu0 %912
    %v914 = vsel %vm265, %v225, -inf
    %915 = vmax.xlane.f32.xlu0 %v914
    %v916 = vpop.xlane.xlu0 %915
    %v917 = vsel %vm265, %v226, -inf
    %918 = vmax.xlane.f32.xlu0 %v917
    %v919 = vpop.xlane.xlu0 %918
    %v920 = vsel %vm265, %v227, -inf
    %921 = vmax.xlane.f32.xlu0 %v920
    %v922 = vpop.xlane.xlu0 %921
    %v923 = vsel %vm265, %v228, -inf
    %924 = vmax.xlane.f32.xlu0 %v923
    %v925 = vpop.xlane.xlu0 %924
    %v926 = vsel %vm265, %v229, -inf
    %927 = vmax.xlane.f32.xlu0 %v926
    %v928 = vpop.xlane.xlu0 %927
    %v929 = vsel %vm265, %v230, -inf
    %930 = vmax.xlane.f32.xlu0 %v929
    %v931 = vpop.xlane.xlu0 %930
    %v932 = vsel %vm265, %v231, -inf
    %933 = vmax.xlane.f32.xlu0 %v932
    %v934 = vpop.xlane.xlu0 %933
    %v935 = vsel %vm265, %v232, -inf
    %936 = vmax.xlane.f32.xlu0 %v935
    %v937 = vpop.xlane.xlu0 %936
    %v938 = vsel %vm265, %v233, -inf
    %939 = vmax.xlane.f32.xlu0 %v938
    %v940 = vpop.xlane.xlu0 %939
    %v941 = vsel %vm265, %v234, -inf
    %942 = vmax.xlane.f32.xlu0 %v941
    %v943 = vpop.xlane.xlu0 %942
    %v944 = vsel %vm265, %v235, -inf
    %945 = vmax.xlane.f32.xlu0 %v944
    %v946 = vpop.xlane.xlu0 %945
    %v947 = vsel %vm265, %v236, -inf
    %948 = vmax.xlane.f32.xlu0 %v947
    %v949 = vpop.xlane.xlu0 %948
    %v950 = vsel %vm265, %v237, -inf
    %951 = vmax.xlane.f32.xlu0 %v950
    %v952 = vpop.xlane.xlu0 %951
    %v953 = vsel %vm265, %v238, -inf
    %954 = vmax.xlane.f32.xlu0 %v953
    %v955 = vpop.xlane.xlu0 %954
    %v956 = vsel %vm265, %v239, -inf
    %957 = vmax.xlane.f32.xlu0 %v956
    %v958 = vpop.xlane.xlu0 %957
    %v959 = vsel %vm265, %v240, -inf
    %960 = vmax.xlane.f32.xlu0 %v959
    %v961 = vpop.xlane.xlu0 %960
    %v962 = vsel %vm265, %v241, -inf
    %963 = vmax.xlane.f32.xlu0 %v962
    %v964 = vpop.xlane.xlu0 %963
    %v965 = vsel %vm265, %v242, -inf
    %966 = vmax.xlane.f32.xlu0 %v965
    %v967 = vpop.xlane.xlu0 %966
    %v968 = vsel %vm265, %v243, -inf
    %969 = vmax.xlane.f32.xlu0 %v968
    %v970 = vpop.xlane.xlu0 %969
    %v971 = vsel %vm265, %v244, -inf
    %972 = vmax.xlane.f32.xlu0 %v971
    %v973 = vpop.xlane.xlu0 %972
    %v974 = vsel %vm265, %v245, -inf
    %975 = vmax.xlane.f32.xlu0 %v974
    %v976 = vpop.xlane.xlu0 %975
    %v977 = vsel %vm265, %v246, -inf
    %978 = vmax.xlane.f32.xlu0 %v977
    %v979 = vpop.xlane.xlu0 %978
    %v980 = vsel %vm265, %v247, -inf
    %981 = vmax.xlane.f32.xlu0 %v980
    %v982 = vpop.xlane.xlu0 %981
    %v983 = vsel %vm265, %v248, -inf
    %984 = vmax.xlane.f32.xlu0 %v983
    %v985 = vpop.xlane.xlu0 %984
    %v986 = vsel %vm265, %v249, -inf
    %987 = vmax.xlane.f32.xlu0 %v986
    %v988 = vpop.xlane.xlu0 %987
    %v989 = vsel %vm265, %v250, -inf
    %990 = vmax.xlane.f32.xlu0 %v989
    %v991 = vpop.xlane.xlu0 %990
    %v992 = vsel %vm265, %v251, -inf
    %993 = vmax.xlane.f32.xlu0 %v992
    %v994 = vpop.xlane.xlu0 %993
    %v995 = vsel %vm265, %v252, -inf
    %996 = vmax.xlane.f32.xlu0 %v995
    %v997 = vpop.xlane.xlu0 %996
    %v998 = vsel %vm265, %v253, -inf
    %999 = vmax.xlane.f32.xlu0 %v998
    %v1000 = vpop.xlane.xlu0 %999
    %v1001 = vsel %vm265, %v254, -inf
    %1002 = vmax.xlane.f32.xlu0 %v1001
    %v1003 = vpop.xlane.xlu0 %1002
    %v1004 = vsel %vm265, %v255, -inf
    %1005 = vmax.xlane.f32.xlu0 %v1004
    %v1006 = vpop.xlane.xlu0 %1005
    %v1007 = vsel %vm265, %v256, -inf
    %1008 = vmax.xlane.f32.xlu0 %v1007
    %v1009 = vpop.xlane.xlu0 %1008
    %v1010 = vsel %vm265, %v257, -inf
    %1011 = vmax.xlane.f32.xlu0 %v1010
    %v1012 = vpop.xlane.xlu0 %1011
    %v1013 = vsel %vm265, %v258, -inf
    %1014 = vmax.xlane.f32.xlu0 %v1013
    %v1015 = vpop.xlane.xlu0 %1014
    %v1016 = vsel %vm265, %v259, -inf
    %1017 = vmax.xlane.f32.xlu0 %v1016
    %v1018 = vpop.xlane.xlu0 %1017
    %v1019 = vsel %vm265, %v260, -inf
    %1020 = vmax.xlane.f32.xlu0 %v1019
    %v1021 = vpop.xlane.xlu0 %1020
    %v1022 = vsel %vm265, %v261, -inf
    %1023 = vmax.xlane.f32.xlu0 %v1022
    %v1024 = vpop.xlane.xlu0 %1023
    %v1025 = vsel %vm265, %v262, -inf
    %1026 = vmax.xlane.f32.xlu0 %v1025
    %v1027 = vpop.xlane.xlu0 %1026
    %v1028 = vsel %vm265, %v263, -inf
    %1029 = vmax.xlane.f32.xlu0 %v1028
    %v1030 = vpop.xlane.xlu0 %1029
    %v1031 = vsel %vm265, %v264, -inf
    %1032 = vmax.xlane.f32.xlu0 %v1031
    %v1033 = vpop.xlane.xlu0 %1032
    %v1034 = vmax.f32 %v268, %v271
    %v1035 = vmax.f32 %v274, %v277
    %v1036 = vmax.f32 %v280, %v283
    %v1037 = vmax.f32 %v286, %v289
    %v1038 = vmax.f32 %v292, %v295
    %v1039 = vmax.f32 %v298, %v301
    %v1040 = vmax.f32 %v304, %v307
    %v1041 = vmax.f32 %v310, %v313
    %v1042 = vmax.f32 %v316, %v319
    %v1043 = vmax.f32 %v322, %v325
    %v1044 = vmax.f32 %v328, %v331
    %v1045 = vmax.f32 %v334, %v337
    %v1046 = vmax.f32 %v340, %v343
    %v1047 = vmax.f32 %v346, %v349
    %v1048 = vmax.f32 %v352, %v355
    %v1049 = vmax.f32 %v358, %v361
    %v1050 = vmax.f32 %v364, %v367
    %v1051 = vmax.f32 %v370, %v373
    %v1052 = vmax.f32 %v376, %v379
    %v1053 = vmax.f32 %v382, %v385
    %v1054 = vmax.f32 %v388, %v391
    %v1055 = vmax.f32 %v394, %v397
    %v1056 = vmax.f32 %v400, %v403
    %v1057 = vmax.f32 %v406, %v409
    %v1058 = vmax.f32 %v412, %v415
    %v1059 = vmax.f32 %v418, %v421
    %v1060 = vmax.f32 %v424, %v427
    %v1061 = vmax.f32 %v430, %v433
    %v1062 = vmax.f32 %v436, %v439
    %v1063 = vmax.f32 %v442, %v445
    %v1064 = vmax.f32 %v448, %v451
    %v1065 = vmax.f32 %v454, %v457
    %v1066 = vmax.f32 %v460, %v463
    %v1067 = vmax.f32 %v466, %v469
    %v1068 = vmax.f32 %v472, %v475
    %v1069 = vmax.f32 %v478, %v481
    %v1070 = vmax.f32 %v484, %v487
    %v1071 = vmax.f32 %v490, %v493
    %v1072 = vmax.f32 %v496, %v499
    %v1073 = vmax.f32 %v502, %v505
    %v1074 = vmax.f32 %v508, %v511
    %v1075 = vmax.f32 %v514, %v517
    %v1076 = vmax.f32 %v520, %v523
    %v1077 = vmax.f32 %v526, %v529
    %v1078 = vmax.f32 %v532, %v535
    %v1079 = vmax.f32 %v538, %v541
    %v1080 = vmax.f32 %v544, %v547
    %v1081 = vmax.f32 %v550, %v553
    %v1082 = vmax.f32 %v556, %v559
    %v1083 = vmax.f32 %v562, %v565
    %v1084 = vmax.f32 %v568, %v571
    %v1085 = vmax.f32 %v574, %v577
    %v1086 = vmax.f32 %v580, %v583
    %v1087 = vmax.f32 %v586, %v589
    %v1088 = vmax.f32 %v592, %v595
    %v1089 = vmax.f32 %v598, %v601
    %v1090 = vmax.f32 %v604, %v607
    %v1091 = vmax.f32 %v610, %v613
    %v1092 = vmax.f32 %v616, %v619
    %v1093 = vmax.f32 %v622, %v625
    %v1094 = vmax.f32 %v628, %v631
    %v1095 = vmax.f32 %v634, %v637
    %v1096 = vmax.f32 %v640, %v643
    %v1097 = vmax.f32 %v646, %v649
    %v1098 = vmax.f32 %v652, %v655
    %v1099 = vmax.f32 %v658, %v661
    %v1100 = vmax.f32 %v664, %v667
    %v1101 = vmax.f32 %v670, %v673
    %v1102 = vmax.f32 %v676, %v679
    %v1103 = vmax.f32 %v682, %v685
    %v1104 = vmax.f32 %v688, %v691
    %v1105 = vmax.f32 %v694, %v697
    %v1106 = vmax.f32 %v700, %v703
    %v1107 = vmax.f32 %v706, %v709
    %v1108 = vmax.f32 %v712, %v715
    %v1109 = vmax.f32 %v718, %v721
    %v1110 = vmax.f32 %v724, %v727
    %v1111 = vmax.f32 %v730, %v733
    %v1112 = vmax.f32 %v736, %v739
    %v1113 = vmax.f32 %v742, %v745
    %v1114 = vmax.f32 %v748, %v751
    %v1115 = vmax.f32 %v754, %v757
    %v1116 = vmax.f32 %v760, %v763
    %v1117 = vmax.f32 %v766, %v769
    %v1118 = vmax.f32 %v772, %v775
    %v1119 = vmax.f32 %v778, %v781
    %v1120 = vmax.f32 %v784, %v787
    %v1121 = vmax.f32 %v790, %v793
    %v1122 = vmax.f32 %v796, %v799
    %v1123 = vmax.f32 %v802, %v805
    %v1124 = vmax.f32 %v808, %v811
    %v1125 = vmax.f32 %v814, %v817
    %v1126 = vmax.f32 %v820, %v823
    %v1127 = vmax.f32 %v826, %v829
    %v1128 = vmax.f32 %v832, %v835
    %v1129 = vmax.f32 %v838, %v841
    %v1130 = vmax.f32 %v844, %v847
    %v1131 = vmax.f32 %v850, %v853
    %v1132 = vmax.f32 %v856, %v859
    %v1133 = vmax.f32 %v862, %v865
    %v1134 = vmax.f32 %v868, %v871
    %v1135 = vmax.f32 %v874, %v877
    %v1136 = vmax.f32 %v880, %v883
    %v1137 = vmax.f32 %v886, %v889
    %v1138 = vmax.f32 %v892, %v895
    %v1139 = vmax.f32 %v898, %v901
    %v1140 = vmax.f32 %v904, %v907
    %v1141 = vmax.f32 %v910, %v913
    %v1142 = vmax.f32 %v916, %v919
    %v1143 = vmax.f32 %v922, %v925
    %v1144 = vmax.f32 %v928, %v931
    %v1145 = vmax.f32 %v934, %v937
    %v1146 = vmax.f32 %v940, %v943
    %v1147 = vmax.f32 %v946, %v949
    %v1148 = vmax.f32 %v952, %v955
    %v1149 = vmax.f32 %v958, %v961
    %v1150 = vmax.f32 %v964, %v967
    %v1151 = vmax.f32 %v970, %v973
    %v1152 = vmax.f32 %v976, %v979
    %v1153 = vmax.f32 %v982, %v985
    %v1154 = vmax.f32 %v988, %v991
    %v1155 = vmax.f32 %v994, %v997
    %v1156 = vmax.f32 %v1000, %v1003
    %v1157 = vmax.f32 %v1006, %v1009
    %v1158 = vmax.f32 %v1012, %v1015
    %v1159 = vmax.f32 %v1018, %v1021
    %v1160 = vmax.f32 %v1024, %v1027
    %v1161 = vmax.f32 %v1030, %v1033
    %v1290 = vlaneseq
    %v1291 = vand.u32 %v1290, 127
    %v1292 = vlaneseq
    %v1293 = vshrl.u32 %v1292, 7
    %v1294 = vsub.s32 %v1291, %v1293
    %v1295 = vrot.slane %v1034, %v1294
    %v1296 = vlaneseq
    %v1297 = vshrl.u32 %v1296, 7
    %v1298 = vsub.s32 %v1291, %v1297
    %v1299 = vrot.slane %v1035, %v1298
    %v1300 = vlaneseq
    %v1301 = vshrl.u32 %v1300, 7
    %v1302 = vsub.s32 %v1291, %v1301
    %v1303 = vrot.slane %v1036, %v1302
    %v1304 = vlaneseq
    %v1305 = vshrl.u32 %v1304, 7
    %v1306 = vsub.s32 %v1291, %v1305
    %v1307 = vrot.slane %v1037, %v1306
    %v1308 = vlaneseq
    %v1309 = vshrl.u32 %v1308, 7
    %v1310 = vsub.s32 %v1291, %v1309
    %v1311 = vrot.slane %v1038, %v1310
    %v1312 = vlaneseq
    %v1313 = vshrl.u32 %v1312, 7
    %v1314 = vsub.s32 %v1291, %v1313
    %v1315 = vrot.slane %v1039, %v1314
    %v1316 = vlaneseq
    %v1317 = vshrl.u32 %v1316, 7
    %v1318 = vsub.s32 %v1291, %v1317
    %v1319 = vrot.slane %v1040, %v1318
    %v1320 = vlaneseq
    %v1321 = vshrl.u32 %v1320, 7
    %v1322 = vsub.s32 %v1291, %v1321
    %v1323 = vrot.slane %v1041, %v1322
    %v1324 = vlaneseq
    %v1325 = vshrl.u32 %v1324, 7
    %v1326 = vsub.s32 %v1291, %v1325
    %v1327 = vrot.slane %v1042, %v1326
    %v1328 = vlaneseq
    %v1329 = vshrl.u32 %v1328, 7
    %v1330 = vsub.s32 %v1291, %v1329
    %v1331 = vrot.slane %v1043, %v1330
    %v1332 = vlaneseq
    %v1333 = vshrl.u32 %v1332, 7
    %v1334 = vsub.s32 %v1291, %v1333
    %v1335 = vrot.slane %v1044, %v1334
    %v1336 = vlaneseq
    %v1337 = vshrl.u32 %v1336, 7
    %v1338 = vsub.s32 %v1291, %v1337
    %v1339 = vrot.slane %v1045, %v1338
    %v1340 = vlaneseq
    %v1341 = vshrl.u32 %v1340, 7
    %v1342 = vsub.s32 %v1291, %v1341
    %v1343 = vrot.slane %v1046, %v1342
    %v1344 = vlaneseq
    %v1345 = vshrl.u32 %v1344, 7
    %v1346 = vsub.s32 %v1291, %v1345
    %v1347 = vrot.slane %v1047, %v1346
    %v1348 = vlaneseq
    %v1349 = vshrl.u32 %v1348, 7
    %v1350 = vsub.s32 %v1291, %v1349
    %v1351 = vrot.slane %v1048, %v1350
    %v1352 = vlaneseq
    %v1353 = vshrl.u32 %v1352, 7
    %v1354 = vsub.s32 %v1291, %v1353
    %v1355 = vrot.slane %v1049, %v1354
    %v1356 = vlaneseq
    %v1357 = vshrl.u32 %v1356, 7
    %v1358 = vsub.s32 %v1291, %v1357
    %v1359 = vrot.slane %v1050, %v1358
    %v1360 = vlaneseq
    %v1361 = vshrl.u32 %v1360, 7
    %v1362 = vsub.s32 %v1291, %v1361
    %v1363 = vrot.slane %v1051, %v1362
    %v1364 = vlaneseq
    %v1365 = vshrl.u32 %v1364, 7
    %v1366 = vsub.s32 %v1291, %v1365
    %v1367 = vrot.slane %v1052, %v1366
    %v1368 = vlaneseq
    %v1369 = vshrl.u32 %v1368, 7
    %v1370 = vsub.s32 %v1291, %v1369
    %v1371 = vrot.slane %v1053, %v1370
    %v1372 = vlaneseq
    %v1373 = vshrl.u32 %v1372, 7
    %v1374 = vsub.s32 %v1291, %v1373
    %v1375 = vrot.slane %v1054, %v1374
    %v1376 = vlaneseq
    %v1377 = vshrl.u32 %v1376, 7
    %v1378 = vsub.s32 %v1291, %v1377
    %v1379 = vrot.slane %v1055, %v1378
    %v1380 = vlaneseq
    %v1381 = vshrl.u32 %v1380, 7
    %v1382 = vsub.s32 %v1291, %v1381
    %v1383 = vrot.slane %v1056, %v1382
    %v1384 = vlaneseq
    %v1385 = vshrl.u32 %v1384, 7
    %v1386 = vsub.s32 %v1291, %v1385
    %v1387 = vrot.slane %v1057, %v1386
    %v1388 = vlaneseq
    %v1389 = vshrl.u32 %v1388, 7
    %v1390 = vsub.s32 %v1291, %v1389
    %v1391 = vrot.slane %v1058, %v1390
    %v1392 = vlaneseq
    %v1393 = vshrl.u32 %v1392, 7
    %v1394 = vsub.s32 %v1291, %v1393
    %v1395 = vrot.slane %v1059, %v1394
    %v1396 = vlaneseq
    %v1397 = vshrl.u32 %v1396, 7
    %v1398 = vsub.s32 %v1291, %v1397
    %v1399 = vrot.slane %v1060, %v1398
    %v1400 = vlaneseq
    %v1401 = vshrl.u32 %v1400, 7
    %v1402 = vsub.s32 %v1291, %v1401
    %v1403 = vrot.slane %v1061, %v1402
    %v1404 = vlaneseq
    %v1405 = vshrl.u32 %v1404, 7
    %v1406 = vsub.s32 %v1291, %v1405
    %v1407 = vrot.slane %v1062, %v1406
    %v1408 = vlaneseq
    %v1409 = vshrl.u32 %v1408, 7
    %v1410 = vsub.s32 %v1291, %v1409
    %v1411 = vrot.slane %v1063, %v1410
    %v1412 = vlaneseq
    %v1413 = vshrl.u32 %v1412, 7
    %v1414 = vsub.s32 %v1291, %v1413
    %v1415 = vrot.slane %v1064, %v1414
    %v1416 = vlaneseq
    %v1417 = vshrl.u32 %v1416, 7
    %v1418 = vsub.s32 %v1291, %v1417
    %v1419 = vrot.slane %v1065, %v1418
    %v1420 = vlaneseq
    %v1421 = vshrl.u32 %v1420, 7
    %v1422 = vsub.s32 %v1291, %v1421
    %v1423 = vrot.slane %v1066, %v1422
    %v1424 = vlaneseq
    %v1425 = vshrl.u32 %v1424, 7
    %v1426 = vsub.s32 %v1291, %v1425
    %v1427 = vrot.slane %v1067, %v1426
    %v1428 = vlaneseq
    %v1429 = vshrl.u32 %v1428, 7
    %v1430 = vsub.s32 %v1291, %v1429
    %v1431 = vrot.slane %v1068, %v1430
    %v1432 = vlaneseq
    %v1433 = vshrl.u32 %v1432, 7
    %v1434 = vsub.s32 %v1291, %v1433
    %v1435 = vrot.slane %v1069, %v1434
    %v1436 = vlaneseq
    %v1437 = vshrl.u32 %v1436, 7
    %v1438 = vsub.s32 %v1291, %v1437
    %v1439 = vrot.slane %v1070, %v1438
    %v1440 = vlaneseq
    %v1441 = vshrl.u32 %v1440, 7
    %v1442 = vsub.s32 %v1291, %v1441
    %v1443 = vrot.slane %v1071, %v1442
    %v1444 = vlaneseq
    %v1445 = vshrl.u32 %v1444, 7
    %v1446 = vsub.s32 %v1291, %v1445
    %v1447 = vrot.slane %v1072, %v1446
    %v1448 = vlaneseq
    %v1449 = vshrl.u32 %v1448, 7
    %v1450 = vsub.s32 %v1291, %v1449
    %v1451 = vrot.slane %v1073, %v1450
    %v1452 = vlaneseq
    %v1453 = vshrl.u32 %v1452, 7
    %v1454 = vsub.s32 %v1291, %v1453
    %v1455 = vrot.slane %v1074, %v1454
    %v1456 = vlaneseq
    %v1457 = vshrl.u32 %v1456, 7
    %v1458 = vsub.s32 %v1291, %v1457
    %v1459 = vrot.slane %v1075, %v1458
    %v1460 = vlaneseq
    %v1461 = vshrl.u32 %v1460, 7
    %v1462 = vsub.s32 %v1291, %v1461
    %v1463 = vrot.slane %v1076, %v1462
    %v1464 = vlaneseq
    %v1465 = vshrl.u32 %v1464, 7
    %v1466 = vsub.s32 %v1291, %v1465
    %v1467 = vrot.slane %v1077, %v1466
    %v1468 = vlaneseq
    %v1469 = vshrl.u32 %v1468, 7
    %v1470 = vsub.s32 %v1291, %v1469
    %v1471 = vrot.slane %v1078, %v1470
    %v1472 = vlaneseq
    %v1473 = vshrl.u32 %v1472, 7
    %v1474 = vsub.s32 %v1291, %v1473
    %v1475 = vrot.slane %v1079, %v1474
    %v1476 = vlaneseq
    %v1477 = vshrl.u32 %v1476, 7
    %v1478 = vsub.s32 %v1291, %v1477
    %v1479 = vrot.slane %v1080, %v1478
    %v1480 = vlaneseq
    %v1481 = vshrl.u32 %v1480, 7
    %v1482 = vsub.s32 %v1291, %v1481
    %v1483 = vrot.slane %v1081, %v1482
    %v1484 = vlaneseq
    %v1485 = vshrl.u32 %v1484, 7
    %v1486 = vsub.s32 %v1291, %v1485
    %v1487 = vrot.slane %v1082, %v1486
    %v1488 = vlaneseq
    %v1489 = vshrl.u32 %v1488, 7
    %v1490 = vsub.s32 %v1291, %v1489
    %v1491 = vrot.slane %v1083, %v1490
    %v1492 = vlaneseq
    %v1493 = vshrl.u32 %v1492, 7
    %v1494 = vsub.s32 %v1291, %v1493
    %v1495 = vrot.slane %v1084, %v1494
    %v1496 = vlaneseq
    %v1497 = vshrl.u32 %v1496, 7
    %v1498 = vsub.s32 %v1291, %v1497
    %v1499 = vrot.slane %v1085, %v1498
    %v1500 = vlaneseq
    %v1501 = vshrl.u32 %v1500, 7
    %v1502 = vsub.s32 %v1291, %v1501
    %v1503 = vrot.slane %v1086, %v1502
    %v1504 = vlaneseq
    %v1505 = vshrl.u32 %v1504, 7
    %v1506 = vsub.s32 %v1291, %v1505
    %v1507 = vrot.slane %v1087, %v1506
    %v1508 = vlaneseq
    %v1509 = vshrl.u32 %v1508, 7
    %v1510 = vsub.s32 %v1291, %v1509
    %v1511 = vrot.slane %v1088, %v1510
    %v1512 = vlaneseq
    %v1513 = vshrl.u32 %v1512, 7
    %v1514 = vsub.s32 %v1291, %v1513
    %v1515 = vrot.slane %v1089, %v1514
    %v1516 = vlaneseq
    %v1517 = vshrl.u32 %v1516, 7
    %v1518 = vsub.s32 %v1291, %v1517
    %v1519 = vrot.slane %v1090, %v1518
    %v1520 = vlaneseq
    %v1521 = vshrl.u32 %v1520, 7
    %v1522 = vsub.s32 %v1291, %v1521
    %v1523 = vrot.slane %v1091, %v1522
    %v1524 = vlaneseq
    %v1525 = vshrl.u32 %v1524, 7
    %v1526 = vsub.s32 %v1291, %v1525
    %v1527 = vrot.slane %v1092, %v1526
    %v1528 = vlaneseq
    %v1529 = vshrl.u32 %v1528, 7
    %v1530 = vsub.s32 %v1291, %v1529
    %v1531 = vrot.slane %v1093, %v1530
    %v1532 = vlaneseq
    %v1533 = vshrl.u32 %v1532, 7
    %v1534 = vsub.s32 %v1291, %v1533
    %v1535 = vrot.slane %v1094, %v1534
    %v1536 = vlaneseq
    %v1537 = vshrl.u32 %v1536, 7
    %v1538 = vsub.s32 %v1291, %v1537
    %v1539 = vrot.slane %v1095, %v1538
    %v1540 = vlaneseq
    %v1541 = vshrl.u32 %v1540, 7
    %v1542 = vsub.s32 %v1291, %v1541
    %v1543 = vrot.slane %v1096, %v1542
    %v1544 = vlaneseq
    %v1545 = vshrl.u32 %v1544, 7
    %v1546 = vsub.s32 %v1291, %v1545
    %v1547 = vrot.slane %v1097, %v1546
    %v1548 = vlaneseq
    %v1549 = vshrl.u32 %v1548, 7
    %v1550 = vsub.s32 %v1291, %v1549
    %v1551 = vrot.slane %v1098, %v1550
    %v1552 = vlaneseq
    %v1553 = vshrl.u32 %v1552, 7
    %v1554 = vsub.s32 %v1291, %v1553
    %v1555 = vrot.slane %v1099, %v1554
    %v1556 = vlaneseq
    %v1557 = vshrl.u32 %v1556, 7
    %v1558 = vsub.s32 %v1291, %v1557
    %v1559 = vrot.slane %v1100, %v1558
    %v1560 = vlaneseq
    %v1561 = vshrl.u32 %v1560, 7
    %v1562 = vsub.s32 %v1291, %v1561
    %v1563 = vrot.slane %v1101, %v1562
    %v1564 = vlaneseq
    %v1565 = vshrl.u32 %v1564, 7
    %v1566 = vsub.s32 %v1291, %v1565
    %v1567 = vrot.slane %v1102, %v1566
    %v1568 = vlaneseq
    %v1569 = vshrl.u32 %v1568, 7
    %v1570 = vsub.s32 %v1291, %v1569
    %v1571 = vrot.slane %v1103, %v1570
    %v1572 = vlaneseq
    %v1573 = vshrl.u32 %v1572, 7
    %v1574 = vsub.s32 %v1291, %v1573
    %v1575 = vrot.slane %v1104, %v1574
    %v1576 = vlaneseq
    %v1577 = vshrl.u32 %v1576, 7
    %v1578 = vsub.s32 %v1291, %v1577
    %v1579 = vrot.slane %v1105, %v1578
    %v1580 = vlaneseq
    %v1581 = vshrl.u32 %v1580, 7
    %v1582 = vsub.s32 %v1291, %v1581
    %v1583 = vrot.slane %v1106, %v1582
    %v1584 = vlaneseq
    %v1585 = vshrl.u32 %v1584, 7
    %v1586 = vsub.s32 %v1291, %v1585
    %v1587 = vrot.slane %v1107, %v1586
    %v1588 = vlaneseq
    %v1589 = vshrl.u32 %v1588, 7
    %v1590 = vsub.s32 %v1291, %v1589
    %v1591 = vrot.slane %v1108, %v1590
    %v1592 = vlaneseq
    %v1593 = vshrl.u32 %v1592, 7
    %v1594 = vsub.s32 %v1291, %v1593
    %v1595 = vrot.slane %v1109, %v1594
    %v1596 = vlaneseq
    %v1597 = vshrl.u32 %v1596, 7
    %v1598 = vsub.s32 %v1291, %v1597
    %v1599 = vrot.slane %v1110, %v1598
    %v1600 = vlaneseq
    %v1601 = vshrl.u32 %v1600, 7
    %v1602 = vsub.s32 %v1291, %v1601
    %v1603 = vrot.slane %v1111, %v1602
    %v1604 = vlaneseq
    %v1605 = vshrl.u32 %v1604, 7
    %v1606 = vsub.s32 %v1291, %v1605
    %v1607 = vrot.slane %v1112, %v1606
    %v1608 = vlaneseq
    %v1609 = vshrl.u32 %v1608, 7
    %v1610 = vsub.s32 %v1291, %v1609
    %v1611 = vrot.slane %v1113, %v1610
    %v1612 = vlaneseq
    %v1613 = vshrl.u32 %v1612, 7
    %v1614 = vsub.s32 %v1291, %v1613
    %v1615 = vrot.slane %v1114, %v1614
    %v1616 = vlaneseq
    %v1617 = vshrl.u32 %v1616, 7
    %v1618 = vsub.s32 %v1291, %v1617
    %v1619 = vrot.slane %v1115, %v1618
    %v1620 = vlaneseq
    %v1621 = vshrl.u32 %v1620, 7
    %v1622 = vsub.s32 %v1291, %v1621
    %v1623 = vrot.slane %v1116, %v1622
    %v1624 = vlaneseq
    %v1625 = vshrl.u32 %v1624, 7
    %v1626 = vsub.s32 %v1291, %v1625
    %v1627 = vrot.slane %v1117, %v1626
    %v1628 = vlaneseq
    %v1629 = vshrl.u32 %v1628, 7
    %v1630 = vsub.s32 %v1291, %v1629
    %v1631 = vrot.slane %v1118, %v1630
    %v1632 = vlaneseq
    %v1633 = vshrl.u32 %v1632, 7
    %v1634 = vsub.s32 %v1291, %v1633
    %v1635 = vrot.slane %v1119, %v1634
    %v1636 = vlaneseq
    %v1637 = vshrl.u32 %v1636, 7
    %v1638 = vsub.s32 %v1291, %v1637
    %v1639 = vrot.slane %v1120, %v1638
    %v1640 = vlaneseq
    %v1641 = vshrl.u32 %v1640, 7
    %v1642 = vsub.s32 %v1291, %v1641
    %v1643 = vrot.slane %v1121, %v1642
    %v1644 = vlaneseq
    %v1645 = vshrl.u32 %v1644, 7
    %v1646 = vsub.s32 %v1291, %v1645
    %v1647 = vrot.slane %v1122, %v1646
    %v1648 = vlaneseq
    %v1649 = vshrl.u32 %v1648, 7
    %v1650 = vsub.s32 %v1291, %v1649
    %v1651 = vrot.slane %v1123, %v1650
    %v1652 = vlaneseq
    %v1653 = vshrl.u32 %v1652, 7
    %v1654 = vsub.s32 %v1291, %v1653
    %v1655 = vrot.slane %v1124, %v1654
    %v1656 = vlaneseq
    %v1657 = vshrl.u32 %v1656, 7
    %v1658 = vsub.s32 %v1291, %v1657
    %v1659 = vrot.slane %v1125, %v1658
    %v1660 = vlaneseq
    %v1661 = vshrl.u32 %v1660, 7
    %v1662 = vsub.s32 %v1291, %v1661
    %v1663 = vrot.slane %v1126, %v1662
    %v1664 = vlaneseq
    %v1665 = vshrl.u32 %v1664, 7
    %v1666 = vsub.s32 %v1291, %v1665
    %v1667 = vrot.slane %v1127, %v1666
    %v1668 = vlaneseq
    %v1669 = vshrl.u32 %v1668, 7
    %v1670 = vsub.s32 %v1291, %v1669
    %v1671 = vrot.slane %v1128, %v1670
    %v1672 = vlaneseq
    %v1673 = vshrl.u32 %v1672, 7
    %v1674 = vsub.s32 %v1291, %v1673
    %v1675 = vrot.slane %v1129, %v1674
    %v1676 = vlaneseq
    %v1677 = vshrl.u32 %v1676, 7
    %v1678 = vsub.s32 %v1291, %v1677
    %v1679 = vrot.slane %v1130, %v1678
    %v1680 = vlaneseq
    %v1681 = vshrl.u32 %v1680, 7
    %v1682 = vsub.s32 %v1291, %v1681
    %v1683 = vrot.slane %v1131, %v1682
    %v1684 = vlaneseq
    %v1685 = vshrl.u32 %v1684, 7
    %v1686 = vsub.s32 %v1291, %v1685
    %v1687 = vrot.slane %v1132, %v1686
    %v1688 = vlaneseq
    %v1689 = vshrl.u32 %v1688, 7
    %v1690 = vsub.s32 %v1291, %v1689
    %v1691 = vrot.slane %v1133, %v1690
    %v1692 = vlaneseq
    %v1693 = vshrl.u32 %v1692, 7
    %v1694 = vsub.s32 %v1291, %v1693
    %v1695 = vrot.slane %v1134, %v1694
    %v1696 = vlaneseq
    %v1697 = vshrl.u32 %v1696, 7
    %v1698 = vsub.s32 %v1291, %v1697
    %v1699 = vrot.slane %v1135, %v1698
    %v1700 = vlaneseq
    %v1701 = vshrl.u32 %v1700, 7
    %v1702 = vsub.s32 %v1291, %v1701
    %v1703 = vrot.slane %v1136, %v1702
    %v1704 = vlaneseq
    %v1705 = vshrl.u32 %v1704, 7
    %v1706 = vsub.s32 %v1291, %v1705
    %v1707 = vrot.slane %v1137, %v1706
    %v1708 = vlaneseq
    %v1709 = vshrl.u32 %v1708, 7
    %v1710 = vsub.s32 %v1291, %v1709
    %v1711 = vrot.slane %v1138, %v1710
    %v1712 = vlaneseq
    %v1713 = vshrl.u32 %v1712, 7
    %v1714 = vsub.s32 %v1291, %v1713
    %v1715 = vrot.slane %v1139, %v1714
    %v1716 = vlaneseq
    %v1717 = vshrl.u32 %v1716, 7
    %v1718 = vsub.s32 %v1291, %v1717
    %v1719 = vrot.slane %v1140, %v1718
    %v1720 = vlaneseq
    %v1721 = vshrl.u32 %v1720, 7
    %v1722 = vsub.s32 %v1291, %v1721
    %v1723 = vrot.slane %v1141, %v1722
    %v1724 = vlaneseq
    %v1725 = vshrl.u32 %v1724, 7
    %v1726 = vsub.s32 %v1291, %v1725
    %v1727 = vrot.slane %v1142, %v1726
    %v1728 = vlaneseq
    %v1729 = vshrl.u32 %v1728, 7
    %v1730 = vsub.s32 %v1291, %v1729
    %v1731 = vrot.slane %v1143, %v1730
    %v1732 = vlaneseq
    %v1733 = vshrl.u32 %v1732, 7
    %v1734 = vsub.s32 %v1291, %v1733
    %v1735 = vrot.slane %v1144, %v1734
    %v1736 = vlaneseq
    %v1737 = vshrl.u32 %v1736, 7
    %v1738 = vsub.s32 %v1291, %v1737
    %v1739 = vrot.slane %v1145, %v1738
    %v1740 = vlaneseq
    %v1741 = vshrl.u32 %v1740, 7
    %v1742 = vsub.s32 %v1291, %v1741
    %v1743 = vrot.slane %v1146, %v1742
    %v1744 = vlaneseq
    %v1745 = vshrl.u32 %v1744, 7
    %v1746 = vsub.s32 %v1291, %v1745
    %v1747 = vrot.slane %v1147, %v1746
    %v1748 = vlaneseq
    %v1749 = vshrl.u32 %v1748, 7
    %v1750 = vsub.s32 %v1291, %v1749
    %v1751 = vrot.slane %v1148, %v1750
    %v1752 = vlaneseq
    %v1753 = vshrl.u32 %v1752, 7
    %v1754 = vsub.s32 %v1291, %v1753
    %v1755 = vrot.slane %v1149, %v1754
    %v1756 = vlaneseq
    %v1757 = vshrl.u32 %v1756, 7
    %v1758 = vsub.s32 %v1291, %v1757
    %v1759 = vrot.slane %v1150, %v1758
    %v1760 = vlaneseq
    %v1761 = vshrl.u32 %v1760, 7
    %v1762 = vsub.s32 %v1291, %v1761
    %v1763 = vrot.slane %v1151, %v1762
    %v1764 = vlaneseq
    %v1765 = vshrl.u32 %v1764, 7
    %v1766 = vsub.s32 %v1291, %v1765
    %v1767 = vrot.slane %v1152, %v1766
    %v1768 = vlaneseq
    %v1769 = vshrl.u32 %v1768, 7
    %v1770 = vsub.s32 %v1291, %v1769
    %v1771 = vrot.slane %v1153, %v1770
    %v1772 = vlaneseq
    %v1773 = vshrl.u32 %v1772, 7
    %v1774 = vsub.s32 %v1291, %v1773
    %v1775 = vrot.slane %v1154, %v1774
    %v1776 = vlaneseq
    %v1777 = vshrl.u32 %v1776, 7
    %v1778 = vsub.s32 %v1291, %v1777
    %v1779 = vrot.slane %v1155, %v1778
    %v1780 = vlaneseq
    %v1781 = vshrl.u32 %v1780, 7
    %v1782 = vsub.s32 %v1291, %v1781
    %v1783 = vrot.slane %v1156, %v1782
    %v1784 = vlaneseq
    %v1785 = vshrl.u32 %v1784, 7
    %v1786 = vsub.s32 %v1291, %v1785
    %v1787 = vrot.slane %v1157, %v1786
    %v1788 = vlaneseq
    %v1789 = vshrl.u32 %v1788, 7
    %v1790 = vsub.s32 %v1291, %v1789
    %v1791 = vrot.slane %v1158, %v1790
    %v1792 = vlaneseq
    %v1793 = vshrl.u32 %v1792, 7
    %v1794 = vsub.s32 %v1291, %v1793
    %v1795 = vrot.slane %v1159, %v1794
    %v1796 = vlaneseq
    %v1797 = vshrl.u32 %v1796, 7
    %v1798 = vsub.s32 %v1291, %v1797
    %v1799 = vrot.slane %v1160, %v1798
    %v1800 = vlaneseq
    %v1801 = vshrl.u32 %v1800, 7
    %v1802 = vsub.s32 %v1291, %v1801
    %v1803 = vrot.slane %v1161, %v1802
    %vm1804 = vcmask 1041409
    %v1805 = vsel %vm1804, %v1299, %v1295
    %vm1806 = vcmask 1042434
    %v1807 = vsel %vm1806, %v1303, %v1805
    %vm1808 = vcmask 1043459
    %v1809 = vsel %vm1808, %v1307, %v1807
    %vm1810 = vcmask 1044484
    %v1811 = vsel %vm1810, %v1311, %v1809
    %vm1812 = vcmask 1045509
    %v1813 = vsel %vm1812, %v1315, %v1811
    %vm1814 = vcmask 1046534
    %v1815 = vsel %vm1814, %v1319, %v1813
    %vm1816 = vcmask 1047559
    %v1817 = vsel %vm1816, %v1323, %v1815
    %v1818 = vsel %vm1804, %v1331, %v1327
    %v1819 = vsel %vm1806, %v1335, %v1818
    %v1820 = vsel %vm1808, %v1339, %v1819
    %v1821 = vsel %vm1810, %v1343, %v1820
    %v1822 = vsel %vm1812, %v1347, %v1821
    %v1823 = vsel %vm1814, %v1351, %v1822
    %v1824 = vsel %vm1816, %v1355, %v1823
    %v1825 = vsel %vm1804, %v1363, %v1359
    %v1826 = vsel %vm1806, %v1367, %v1825
    %v1827 = vsel %vm1808, %v1371, %v1826
    %v1828 = vsel %vm1810, %v1375, %v1827
    %v1829 = vsel %vm1812, %v1379, %v1828
    %v1830 = vsel %vm1814, %v1383, %v1829
    %v1831 = vsel %vm1816, %v1387, %v1830
    %v1832 = vsel %vm1804, %v1395, %v1391
    %v1833 = vsel %vm1806, %v1399, %v1832
    %v1834 = vsel %vm1808, %v1403, %v1833
    %v1835 = vsel %vm1810, %v1407, %v1834
    %v1836 = vsel %vm1812, %v1411, %v1835
    %v1837 = vsel %vm1814, %v1415, %v1836
    %v1838 = vsel %vm1816, %v1419, %v1837
    %v1839 = vsel %vm1804, %v1427, %v1423
    %v1840 = vsel %vm1806, %v1431, %v1839
    %v1841 = vsel %vm1808, %v1435, %v1840
    %v1842 = vsel %vm1810, %v1439, %v1841
    %v1843 = vsel %vm1812, %v1443, %v1842
    %v1844 = vsel %vm1814, %v1447, %v1843
    %v1845 = vsel %vm1816, %v1451, %v1844
    %v1846 = vsel %vm1804, %v1459, %v1455
    %v1847 = vsel %vm1806, %v1463, %v1846
    %v1848 = vsel %vm1808, %v1467, %v1847
    %v1849 = vsel %vm1810, %v1471, %v1848
    %v1850 = vsel %vm1812, %v1475, %v1849
    %v1851 = vsel %vm1814, %v1479, %v1850
    %v1852 = vsel %vm1816, %v1483, %v1851
    %v1853 = vsel %vm1804, %v1491, %v1487
    %v1854 = vsel %vm1806, %v1495, %v1853
    %v1855 = vsel %vm1808, %v1499, %v1854
    %v1856 = vsel %vm1810, %v1503, %v1855
    %v1857 = vsel %vm1812, %v1507, %v1856
    %v1858 = vsel %vm1814, %v1511, %v1857
    %v1859 = vsel %vm1816, %v1515, %v1858
    %v1860 = vsel %vm1804, %v1523, %v1519
    %v1861 = vsel %vm1806, %v1527, %v1860
    %v1862 = vsel %vm1808, %v1531, %v1861
    %v1863 = vsel %vm1810, %v1535, %v1862
    %v1864 = vsel %vm1812, %v1539, %v1863
    %v1865 = vsel %vm1814, %v1543, %v1864
    %v1866 = vsel %vm1816, %v1547, %v1865
    %v1867 = vsel %vm1804, %v1555, %v1551
    %v1868 = vsel %vm1806, %v1559, %v1867
    %v1869 = vsel %vm1808, %v1563, %v1868
    %v1870 = vsel %vm1810, %v1567, %v1869
    %v1871 = vsel %vm1812, %v1571, %v1870
    %v1872 = vsel %vm1814, %v1575, %v1871
    %v1873 = vsel %vm1816, %v1579, %v1872
    %v1874 = vsel %vm1804, %v1587, %v1583
    %v1875 = vsel %vm1806, %v1591, %v1874
    %v1876 = vsel %vm1808, %v1595, %v1875
    %v1877 = vsel %vm1810, %v1599, %v1876
    %v1878 = vsel %vm1812, %v1603, %v1877
    %v1879 = vsel %vm1814, %v1607, %v1878
    %v1880 = vsel %vm1816, %v1611, %v1879
    %v1881 = vsel %vm1804, %v1619, %v1615
    %v1882 = vsel %vm1806, %v1623, %v1881
    %v1883 = vsel %vm1808, %v1627, %v1882
    %v1884 = vsel %vm1810, %v1631, %v1883
    %v1885 = vsel %vm1812, %v1635, %v1884
    %v1886 = vsel %vm1814, %v1639, %v1885
    %v1887 = vsel %vm1816, %v1643, %v1886
    %v1888 = vsel %vm1804, %v1651, %v1647
    %v1889 = vsel %vm1806, %v1655, %v1888
    %v1890 = vsel %vm1808, %v1659, %v1889
    %v1891 = vsel %vm1810, %v1663, %v1890
    %v1892 = vsel %vm1812, %v1667, %v1891
    %v1893 = vsel %vm1814, %v1671, %v1892
    %v1894 = vsel %vm1816, %v1675, %v1893
    %v1895 = vsel %vm1804, %v1683, %v1679
    %v1896 = vsel %vm1806, %v1687, %v1895
    %v1897 = vsel %vm1808, %v1691, %v1896
    %v1898 = vsel %vm1810, %v1695, %v1897
    %v1899 = vsel %vm1812, %v1699, %v1898
    %v1900 = vsel %vm1814, %v1703, %v1899
    %v1901 = vsel %vm1816, %v1707, %v1900
    %v1902 = vsel %vm1804, %v1715, %v1711
    %v1903 = vsel %vm1806, %v1719, %v1902
    %v1904 = vsel %vm1808, %v1723, %v1903
    %v1905 = vsel %vm1810, %v1727, %v1904
    %v1906 = vsel %vm1812, %v1731, %v1905
    %v1907 = vsel %vm1814, %v1735, %v1906
    %v1908 = vsel %vm1816, %v1739, %v1907
    %v1909 = vsel %vm1804, %v1747, %v1743
    %v1910 = vsel %vm1806, %v1751, %v1909
    %v1911 = vsel %vm1808, %v1755, %v1910
    %v1912 = vsel %vm1810, %v1759, %v1911
    %v1913 = vsel %vm1812, %v1763, %v1912
    %v1914 = vsel %vm1814, %v1767, %v1913
    %v1915 = vsel %vm1816, %v1771, %v1914
    %v1916 = vsel %vm1804, %v1779, %v1775
    %v1917 = vsel %vm1806, %v1783, %v1916
    %v1918 = vsel %vm1808, %v1787, %v1917
    %v1919 = vsel %vm1810, %v1791, %v1918
    %v1920 = vsel %vm1812, %v1795, %v1919
    %v1921 = vsel %vm1814, %v1799, %v1920
    %v1922 = vsel %vm1816, %v1803, %v1921
    %vm1939 = vcmask 64512
    %1940 = vst.msk [vmem:[#allocation2] sm:$0xff] %vm1939, %v1817
    %1941 = vst.msk [vmem:[#allocation2 + $0x8] sm:$0xff] %vm1939, %v1824
    %1942 = vst.msk [vmem:[#allocation2 + $0x10] sm:$0xff] %vm1939, %v1831
    %1943 = vst.msk [vmem:[#allocation2 + $0x18] sm:$0xff] %vm1939, %v1838
    %1944 = vst.msk [vmem:[#allocation2 + $0x20] sm:$0xff] %vm1939, %v1845
    %1945 = vst.msk [vmem:[#allocation2 + $0x28] sm:$0xff] %vm1939, %v1852
    %1946 = vst.msk [vmem:[#allocation2 + $0x30] sm:$0xff] %vm1939, %v1859
    %1947 = vst.msk [vmem:[#allocation2 + $0x38] sm:$0xff] %vm1939, %v1866
    %1948 = vst.msk [vmem:[#allocation2 + $0x40] sm:$0xff] %vm1939, %v1873
    %1949 = vst.msk [vmem:[#allocation2 + $0x48] sm:$0xff] %vm1939, %v1880
    %1950 = vst.msk [vmem:[#allocation2 + $0x50] sm:$0xff] %vm1939, %v1887
    %1951 = vst.msk [vmem:[#allocation2 + $0x58] sm:$0xff] %vm1939, %v1894
    %1952 = vst.msk [vmem:[#allocation2 + $0x60] sm:$0xff] %vm1939, %v1901
    %1953 = vst.msk [vmem:[#allocation2 + $0x68] sm:$0xff] %vm1939, %v1908
    %1954 = vst.msk [vmem:[#allocation2 + $0x70] sm:$0xff] %vm1939, %v1915
    %1955 = vst.msk [vmem:[#allocation2 + $0x78] sm:$0xff] %vm1939, %v1922
    // Predicated region
    $region6: #{encoder_block_forward.5} parent=1 // pred_check
      _
    $region7: #{encoder_block_forward.5} parent=1 // pred_check_branch
      %1957 = sbr.rel (0) target = $region9
    $region8: #{encoder_block_forward.5} parent=1 // pred_region
      %s1959 = ssub.s32 2048, 2048
      %1960 = vsyncadd [#allocation3], %s1959
      %s1961 = sshll.u32 [#allocation2], 4
      %s1962 = int_to_ptr.vmem [resolvable:$true] %s1961
      %1967 = dma.vmem_to_hbm [thread:$0]  %s1962, 2048, %s1, [#allocation3], 128, 128, 8
    $region9: #{encoder_block_forward.5} parent=1 // pred_fallthru
      _
    // Predicated region
    $region10: #{encoder_block_forward.5} parent=1 // pred_check
      _
    $region11: #{encoder_block_forward.5} parent=1 // pred_check_branch
      %1969 = sbr.rel (0) target = $region13
    $region12: #{encoder_block_forward.5} parent=1 // pred_region
      %1970 = dma.done [#allocation3], 2048
    $region13: #{encoder_block_forward.5} parent=1 // pred_fallthru
      _
    %1971 = vsyncpa [#allocation3], 1

</llo_original>
